<compile_context>
chip_gen: v5e
topology: v5e:2x2
jax: 0.10.0
libtpu: 0.0.40
codegen_flags: <defaults>
</compile_context>

<pallas_src>
import functools
import math

import jax
import jax.numpy as jnp
import numpy as np
from jax import lax
from jax.experimental import pallas as pl
from jax.experimental.pallas import tpu as pltpu

# ----- model dims (consistent with the module's __init__) -----
INPUT_SIZE = 4
HIDDEN = 32
NUM_LAYERS = 2
OUTPUT_SIZE = 1
NUM_HEADS = 4
HEAD_DIM = HIDDEN // NUM_HEADS
LN_EPS = 1e-5

BATCH = 8   # must equal SEQ (see note above)
SEQ = 8

# ----- packed-blob row offsets (big sub-blocks 8-aligned) -----
LSTM_XPROJ_ROW = 0            # rows [0, INPUT_SIZE+1): [W_ih1^T ; bias row (b1 | b2)]
LSTM_WBIG_ROW = 8             # rows [8, 8+2H): fused recurrence RHS
ATTN_W_ROW = 0                # rows [0, H):  [Wk^T | Wv^T | Wq^T | Wo^T]
ATTN_B_ROW = HIDDEN           # row   H:      [bk   | bv   | bq   | bo ]
ATTN_BD_ROW = 40              # rows [40, 40+H): block-diag head-ones (cols 0:H)
HEAD_GAMMA_ROW = 0
HEAD_BETA_ROW = 1
HEAD_FC1B_ROW = 2
HEAD_FC2B_ROW = 3
HEAD_FC1W_ROW = 8             # rows [8, 8+H)
HEAD_FC2W_ROW = 8 + HIDDEN    # rows [40, 40+H)


# ============================================================
# Fused forward kernel.
# ============================================================
def _forecaster_kernel(x_ref, lstm_ref, attn_ref, head_ref, o_ref,
                       xp_sc, h2_sc, llast_sc, *, seq, batch):
    T, B, H = seq, batch, HIDDEN
    H2 = 2 * H                     # width of the fused [layer1 | layer2] state

    # ---- hoisted layer-1 input projection (+ both layers' biases) over all
    # T*B rows in ONE matmul; the ones-column appended to x folds the bias in.
    xp_sc[...] = jnp.dot(
        x_ref[...], lstm_ref[pl.ds(LSTM_XPROJ_ROW, INPUT_SIZE + 1), :],
        preferred_element_type=jnp.float32)                      # (T*B, 8H)

    # Fused recurrence RHS:
    #   [h1 | h2] @ [[W_hh1 | W_ih2],
    #                [  0   | W_hh2]]
    # with output columns ordered [i1 i2 | f1 f2 | o1 o2 | g1 g2]  (8H = 256).
    w_big = lstm_ref[pl.ds(LSTM_WBIG_ROW, H2), :]                # (2H, 8H)

    keep_l1 = (lax.broadcasted_iota(jnp.int32, (1, H2), 1) < H).astype(jnp.float32)

    h_cat = jnp.zeros((B, H2), jnp.float32)                      # [h1 | h2]
    c_cat = jnp.zeros((B, H2), jnp.float32)                      # [c1 | c2]

    # ---- wavefronted 2-layer recurrence: step s = layer-1 step s AND layer-2
    # step s-1, fused into one MXU pass + one 6H-sigmoid + one 2H-tanh.
    for s in range(T + 1):
        row = min(s, T - 1) * B                                  # clamp (layer-1 unused at s==T)
        gates = xp_sc[pl.ds(row, B), :] + jnp.dot(
            h_cat, w_big, preferred_element_type=jnp.float32)    # (B, 8H)
        sig = jax.nn.sigmoid(gates[:, 0:6 * H])                  # i|f|o of both layers
        g_cat = jnp.tanh(gates[:, 6 * H:8 * H])                  # g  of both layers
        i_cat = sig[:, 0:H2]
        f_cat = sig[:, H2:2 * H2]
        o_cat = sig[:, 2 * H2:3 * H2]
        c_cat = f_cat * c_cat + i_cat * g_cat
        h_cat = o_cat * jnp.tanh(c_cat)
        if s == 0:
            # Layer-2 has not seen a real input yet: keep its state at zero so
            # step 1 starts from (h2, c2) = 0.
            h_cat = h_cat * keep_l1
            c_cat = c_cat * keep_l1
        else:
            h2_t = h_cat[:, H:H2]                                # layer-2 output at t = s-1
            h2_sc[pl.ds((s - 1) * B, B), :] = h2_t               # lstm_out, time-major rows
            llast_sc[pl.ds(s - 1, 1), :] = h2_t[B - 1:B, :]      # lstm_out[t, -1, :]

    # ---- multi-head self-attention (only the last query position is consumed
    # downstream via combined[:, -1, :]; softmax rows are independent, so this
    # is exact).
    scale = 1.0 / math.sqrt(HEAD_DIM)
    w_all = attn_ref[pl.ds(ATTN_W_ROW, H), :]                    # (H, 4H): [Wk|Wv|Wq|Wo]
    b_all = attn_ref[pl.ds(ATTN_B_ROW, 1), :]                    # (1, 4H)
    bd_full = attn_ref[pl.ds(ATTN_BD_ROW, H), :]                 # (H, 4H), cols 0:H hold ones-blocks
    bd_ones = bd_full[:, 0:H]                                    # (H, H) block-diag head mask

    h2_all = h2_sc[...]                                          # (T*B, H), row = t*B + b
    h2_last = h_cat[:, H:H2]                                     # (B, H) = lstm_out at t = T-1

    kv = jnp.dot(h2_all, w_all[:, 0:2 * H],
                 preferred_element_type=jnp.float32) + b_all[:, 0:2 * H]     # (T*B, 2H)
    q_last = (jnp.dot(h2_last, w_all[:, 2 * H:3 * H],
                      preferred_element_type=jnp.float32)
              + b_all[:, 2 * H:3 * H]) * scale                               # (B, H)

    k3 = kv[:, 0:H].reshape(T, B, H)
    v3 = kv[:, H:2 * H].reshape(T, B, H)
    prod = (q_last[None, :, :] * k3).reshape(T * B, H)                       # (T*B, H)
    # One block-diag-ones matmul both sums each head's 8 lanes and broadcasts
    # the sum back across them, so the softmax stays lane-dense at width H.
    s_wide = jnp.dot(prod, bd_ones, preferred_element_type=jnp.float32)      # (T*B, H)
    s3 = s_wide.reshape(T, B, H)
    s3 = s3 - jnp.max(s3, axis=0, keepdims=True)                             # stabilize
    p3 = jnp.exp(s3)
    p3 = p3 / jnp.sum(p3, axis=0, keepdims=True)                             # softmax over keys (T)
    ctx = jnp.sum(p3 * v3, axis=0)                                           # (B, H)
    attn_last = jnp.dot(ctx, w_all[:, 3 * H:4 * H],
                        preferred_element_type=jnp.float32) + b_all[:, 3 * H:4 * H]

    # ---- residual + LayerNorm + fc1 + relu + fc2 (only the rows feeding
    # combined[:, -1, :]).
    l_last = llast_sc[...]                                       # (T, H) == lstm_out[:, -1, :]
    comb = l_last + attn_last                                    # requires T == B (module quirk)
    mu = jnp.mean(comb, axis=-1, keepdims=True)
    var = jnp.mean(jnp.square(comb - mu), axis=-1, keepdims=True)
    y = ((comb - mu) * lax.rsqrt(var + LN_EPS)
         * head_ref[pl.ds(HEAD_GAMMA_ROW, 1), :]
         + head_ref[pl.ds(HEAD_BETA_ROW, 1), :])
    hfc = jnp.maximum(
        jnp.dot(y, head_ref[pl.ds(HEAD_FC1W_ROW, H), :],
                preferred_element_type=jnp.float32)
        + head_ref[pl.ds(HEAD_FC1B_ROW, 1), :], 0.0)
    out_full = (jnp.dot(hfc, head_ref[pl.ds(HEAD_FC2W_ROW, H), :],
                        preferred_element_type=jnp.float32)
                + head_ref[pl.ds(HEAD_FC2B_ROW, 1), :])
    o_ref[...] = out_full[:, 0:OUTPUT_SIZE].astype(o_ref.dtype)


def forecaster_forward(packed, x_bti):
    """x: (B, T, input_size), batch_first as in the torch module."""
    B, T, F = x_bti.shape
    assert B == T, "original module's residual add requires batch == seq_len"
    assert F == INPUT_SIZE
    # time-major flatten: row = t*B + b; append a ones column so the packed bias
    # row folds into the hoisted input-projection matmul.
    x_flat = jnp.transpose(x_bti, (1, 0, 2)).reshape(T * B, F).astype(jnp.float32)
    x_aug = jnp.concatenate([x_flat, jnp.ones((T * B, 1), jnp.float32)], axis=1)

    vmem = functools.partial(pl.BlockSpec, memory_space=pltpu.MemorySpace.VMEM)
    kernel = functools.partial(_forecaster_kernel, seq=T, batch=B)
    # TODO(synk): on v7x the second TensorCore is idle for this single-shot,
    # latency-bound forward; for many independent sequences add a leading
    # "parallel" grid axis over sequence groups.
    return pl.pallas_call(
        kernel,
        out_shape=jax.ShapeDtypeStruct((B, OUTPUT_SIZE), jnp.float32),
        in_specs=[vmem()] * 4,
        out_specs=vmem(),
        scratch_shapes=[
            pltpu.VMEM((T * B, 8 * HIDDEN), jnp.float32),   # hoisted input proj (both layers' gate cols)
            pltpu.VMEM((T * B, HIDDEN), jnp.float32),       # layer-2 hidden states == lstm_out (time-major)
            pltpu.VMEM((T, HIDDEN), jnp.float32),           # lstm_out[:, -1, :] rows (gathered in-loop)
        ],
    )(x_aug, packed["lstm"], packed["attn"], packed["head"])


# ============================================================
# Deterministic raw (torch-layout) parameters + host-side packing.
# ============================================================
def make_raw_params(key):
    keys = iter(jax.random.split(key, 20))

    def u(shape, scale):
        return jax.random.uniform(next(keys), shape, jnp.float32,
                                  minval=-scale, maxval=scale)

    stdv = 1.0 / math.sqrt(HIDDEN)
    raw = {"lstm": []}
    for layer in range(NUM_LAYERS):
        f_in = INPUT_SIZE if layer == 0 else HIDDEN
        raw["lstm"].append({
            "w_ih": u((4 * HIDDEN, f_in), stdv),    # torch gate row order i,f,g,o
            "w_hh": u((4 * HIDDEN, HIDDEN), stdv),
            "b_ih": u((4 * HIDDEN,), stdv),
            "b_hh": u((4 * HIDDEN,), stdv),
        })
    raw["in_proj_w"] = u((3 * HIDDEN, HIDDEN), stdv)    # [q; k; v] stacked
    raw["in_proj_b"] = u((3 * HIDDEN,), stdv)
    raw["out_proj_w"] = u((HIDDEN, HIDDEN), stdv)
    raw["out_proj_b"] = u((HIDDEN,), stdv)
    raw["ln_gamma"] = 1.0 + u((HIDDEN,), 0.1)
    raw["ln_beta"] = u((HIDDEN,), 0.1)
    raw["fc1_w"] = u((HIDDEN // 2, HIDDEN), 1.0 / math.sqrt(HIDDEN))
    raw["fc1_b"] = u((HIDDEN // 2,), 1.0 / math.sqrt(HIDDEN))
    raw["fc2_w"] = u((OUTPUT_SIZE, HIDDEN // 2), 1.0 / math.sqrt(HIDDEN // 2))
    raw["fc2_b"] = u((OUTPUT_SIZE,), 1.0 / math.sqrt(HIDDEN // 2))
    return raw


def pack_params(raw):
    """Pack all parameters into 3 f32 blobs consumed by the fused kernel."""
    H = HIDDEN
    torch_row = {"i": 0, "f": 1, "g": 2, "o": 3}      # pytorch gate row-block order
    col_block = {"i": 0, "f": 1, "o": 2, "g": 3}      # fused kernel column-block order

    def gblk(a, g):
        r = torch_row[g] * H
        return np.asarray(a, np.float32)[r:r + H]

    l1, l2 = raw["lstm"]
    b1 = np.asarray(l1["b_ih"], np.float32) + np.asarray(l1["b_hh"], np.float32)
    b2 = np.asarray(l2["b_ih"], np.float32) + np.asarray(l2["b_hh"], np.float32)

    blob_lstm = np.zeros((LSTM_WBIG_ROW + 2 * H, 8 * H), np.float32)
    for g in ("i", "f", "o", "g"):
        c1 = col_block[g] * 2 * H          # layer-1 columns for this gate
        c2 = c1 + H                        # layer-2 columns for this gate
        blob_lstm[0:INPUT_SIZE, c1:c1 + H] = gblk(l1["w_ih"], g).T
        blob_lstm[INPUT_SIZE, c1:c1 + H] = gblk(b1, g)
        blob_lstm[INPUT_SIZE, c2:c2 + H] = gblk(b2, g)
        blob_lstm[LSTM_WBIG_ROW:LSTM_WBIG_ROW + H, c1:c1 + H] = gblk(l1["w_hh"], g).T      # h1 -> L1 gates
        blob_lstm[LSTM_WBIG_ROW:LSTM_WBIG_ROW + H, c2:c2 + H] = gblk(l2["w_ih"], g).T      # h1 -> L2 gates
        blob_lstm[LSTM_WBIG_ROW + H:LSTM_WBIG_ROW + 2 * H, c2:c2 + H] = gblk(l2["w_hh"], g).T  # h2 -> L2 gates

    ipw = np.asarray(raw["in_proj_w"], np.float32)
    ipb = np.asarray(raw["in_proj_b"], np.float32)
    blob_attn = np.zeros((ATTN_BD_ROW + H, 4 * H), np.float32)
    blob_attn[0:H, 0:H] = ipw[H:2 * H, :].T            # K
    blob_attn[0:H, H:2 * H] = ipw[2 * H:3 * H, :].T    # V
    blob_attn[0:H, 2 * H:3 * H] = ipw[0:H, :].T        # Q
    blob_attn[0:H, 3 * H:4 * H] = np.asarray(raw["out_proj_w"], np.float32).T
    blob_attn[ATTN_B_ROW, 0:H] = ipb[H:2 * H]
    blob_attn[ATTN_B_ROW, H:2 * H] = ipb[2 * H:3 * H]
    blob_attn[ATTN_B_ROW, 2 * H:3 * H] = ipb[0:H]
    blob_attn[ATTN_B_ROW, 3 * H:4 * H] = np.asarray(raw["out_proj_b"], np.float32)
    rr = np.arange(H)
    blob_attn[ATTN_BD_ROW:ATTN_BD_ROW + H, 0:H] = (
        (rr[:, None] // HEAD_DIM) == (rr[None, :] // HEAD_DIM)).astype(np.float32)

    blob_head = np.zeros((HEAD_FC2W_ROW + H, H), np.float32)
    blob_head[HEAD_GAMMA_ROW, :] = np.asarray(raw["ln_gamma"], np.float32)
    blob_head[HEAD_BETA_ROW, :] = np.asarray(raw["ln_beta"], np.float32)
    blob_head[HEAD_FC1B_ROW, 0:H // 2] = np.asarray(raw["fc1_b"], np.float32)
    blob_head[HEAD_FC2B_ROW, 0:OUTPUT_SIZE] = np.asarray(raw["fc2_b"], np.float32)
    blob_head[HEAD_FC1W_ROW:HEAD_FC1W_ROW + H, 0:H // 2] = np.asarray(raw["fc1_w"], np.float32).T
    blob_head[HEAD_FC2W_ROW:HEAD_FC2W_ROW + H // 2, 0:OUTPUT_SIZE] = np.asarray(raw["fc2_w"], np.float32).T

    return {"lstm": jnp.asarray(blob_lstm),
            "attn": jnp.asarray(blob_attn),
            "head": jnp.asarray(blob_head)}


# ============================================================
# Pure-JAX reference (correctness check of the fused kernel).
# ============================================================
def reference_forward(raw, x_bti):
    B, T, _ = x_bti.shape
    H = HIDDEN
    h = jnp.transpose(x_bti, (1, 0, 2)).astype(jnp.float32)
    for layer in raw["lstm"]:
        w_ih_t = layer["w_ih"].T
        w_hh_t = layer["w_hh"].T
        bias = (layer["b_ih"] + layer["b_hh"]).reshape(1, -1)

        def step(carry, x_t, w_ih_t=w_ih_t, w_hh_t=w_hh_t, bias=bias):
            hp, cp = carry
            gates = x_t @ w_ih_t + hp @ w_hh_t + bias
            i, f, g, o = jnp.split(gates, 4, axis=-1)
            i, f, o = jax.nn.sigmoid(i), jax.nn.sigmoid(f), jax.nn.sigmoid(o)
            g = jnp.tanh(g)
            c = f * cp + i * g
            hn = o * jnp.tanh(c)
            return (hn, c), hn

        init = (jnp.zeros((B, H), jnp.float32), jnp.zeros((B, H), jnp.float32))
        _, h = jax.lax.scan(step, init, h)
    lstm_tbh = h                                                  # (T, B, H)

    ipw, ipb = raw["in_proj_w"], raw["in_proj_b"]
    q = lstm_tbh @ ipw[0:H, :].T + ipb[0:H]
    k = lstm_tbh @ ipw[H:2 * H, :].T + ipb[H:2 * H]
    v = lstm_tbh @ ipw[2 * H:3 * H, :].T + ipb[2 * H:3 * H]

    def split_heads(z):
        return jnp.transpose(z.reshape(T, B, NUM_HEADS, HEAD_DIM), (1, 2, 0, 3))

    qh, kh, vh = split_heads(q), split_heads(k), split_heads(v)
    s = jnp.einsum("bhtd,bhsd->bhts", qh, kh) / math.sqrt(HEAD_DIM)
    p_attn = jax.nn.softmax(s, axis=-1)
    o = jnp.einsum("bhts,bhsd->bhtd", p_attn, vh)
    attn_tbh = (jnp.transpose(o, (2, 0, 1, 3)).reshape(T, B, H)
                @ raw["out_proj_w"].T + raw["out_proj_b"])
    attn_bth = jnp.transpose(attn_tbh, (1, 0, 2))

    combined = lstm_tbh + attn_bth                    # (T,B,H)+(B,T,H): needs T==B (as in torch)
    mu = combined.mean(-1, keepdims=True)
    var = ((combined - mu) ** 2).mean(-1, keepdims=True)
    ln = (combined - mu) / jnp.sqrt(var + LN_EPS) * raw["ln_gamma"] + raw["ln_beta"]
    last = ln[:, -1, :]
    h1 = jnp.maximum(last @ raw["fc1_w"].T + raw["fc1_b"], 0.0)
    return h1 @ raw["fc2_w"].T + raw["fc2_b"]


if __name__ == "__main__":
    assert BATCH == SEQ, "original module's residual add requires batch == seq_len"
    key = jax.random.PRNGKey(0)
    pkey, xkey = jax.random.split(key)
    raw = make_raw_params(pkey)
    packed = pack_params(raw)
    x = jax.random.normal(xkey, (BATCH, SEQ, INPUT_SIZE), jnp.float32)

    fwd = jax.jit(forecaster_forward)
    out = jax.block_until_ready(fwd(packed, x))
    assert out.shape == (BATCH, OUTPUT_SIZE)

    ref = jax.block_until_ready(reference_forward(raw, x))
    np.testing.assert_allclose(np.asarray(out), np.asarray(ref), rtol=2e-2, atol=2e-2)

    print("KERNEL_OK")
</pallas_src>

<mosaic_0001>
module attributes {stable_mosaic.version = 11 : i64} {
  func.func @_forecaster_kernel(%arg0: memref<64x5xf32, #tpu.memory_space<vmem>>, %arg1: memref<72x256xf32, #tpu.memory_space<vmem>>, %arg2: memref<72x128xf32, #tpu.memory_space<vmem>>, %arg3: memref<72x32xf32, #tpu.memory_space<vmem>>, %arg4: memref<8x1xf32, #tpu.memory_space<vmem>>, %arg5: memref<64x256xf32, #tpu.memory_space<vmem>>, %arg6: memref<64x32xf32, #tpu.memory_space<vmem>>, %arg7: memref<8x32xf32, #tpu.memory_space<vmem>>) attributes {dimension_semantics = [], scalar_prefetch = 0 : i64, scratch_operands = 3 : i64, tpu.core_type = #tpu.core_type<tc>} {
    %c0 = arith.constant 0 : index
    %c0_0 = arith.constant 0 : index
    %0 = vector.load %arg0[%c0, %c0_0] : memref<64x5xf32, #tpu.memory_space<vmem>>, vector<64x5xf32>
    %c0_1 = arith.constant 0 : index
    %c0_2 = arith.constant 0 : index
    %1 = vector.load %arg1[%c0_1, %c0_2] : memref<72x256xf32, #tpu.memory_space<vmem>>, vector<5x256xf32>
    %cst = arith.constant dense<0.000000e+00> : vector<64x256xf32>
    %2 = tpu.matmul %0, %1, %cst {dimension_numbers = #tpu.dot_dimension_numbers<[1], [0], [0], [1], [0, 0, 1, 1], [], []>} : vector<64x5xf32>, vector<5x256xf32>, vector<64x256xf32> -> vector<64x256xf32>
    %c0_3 = arith.constant 0 : index
    %c0_4 = arith.constant 0 : index
    %3 = vector.load %arg5[%c0_3, %c0_4] : memref<64x256xf32, #tpu.memory_space<vmem>>, vector<64x256xf32>
    tpu.vector_store %arg5[%c0_3, %c0_4], %2 {strides = array<i32>} : memref<64x256xf32, #tpu.memory_space<vmem>>, vector<64x256xf32>,
    %c8 = arith.constant 8 : index
    %c0_5 = arith.constant 0 : index
    %4 = vector.load %arg1[%c8, %c0_5] : memref<72x256xf32, #tpu.memory_space<vmem>>, vector<64x256xf32>
    %5 = tpu.iota {dimensions = array<i32: 1>} : vector<1x64xi32>
    %c32_i32 = arith.constant 32 : i32
    %6 = vector.broadcast %c32_i32 : i32 to vector<1x64xi32>
    %7 = arith.cmpi slt, %5, %6 : vector<1x64xi32>
    %8 = arith.extui %7 : vector<1x64xi1> to vector<1x64xi32>
    %9 = arith.sitofp %8 : vector<1x64xi32> to vector<1x64xf32>
    %cst_6 = arith.constant 0.000000e+00 : f32
    %10 = vector.broadcast %cst_6 : f32 to vector<8x64xf32>
    %cst_7 = arith.constant 0.000000e+00 : f32
    %11 = vector.broadcast %cst_7 : f32 to vector<8x64xf32>
    %c0_8 = arith.constant 0 : index
    %c0_9 = arith.constant 0 : index
    %12 = vector.load %arg5[%c0_8, %c0_9] : memref<64x256xf32, #tpu.memory_space<vmem>>, vector<8x256xf32>
    %cst_10 = arith.constant dense<0.000000e+00> : vector<8x256xf32>
    %13 = tpu.matmul %10, %4, %cst_10 {dimension_numbers = #tpu.dot_dimension_numbers<[1], [0], [0], [1], [0, 0, 1, 1], [], []>} : vector<8x64xf32>, vector<64x256xf32>, vector<8x256xf32> -> vector<8x256xf32>
    %14 = arith.addf %12, %13 : vector<8x256xf32>
    %15 = vector.extract_strided_slice %14 {offsets = [0, 0], sizes = [8, 192], strides = [1, 1]} : vector<8x256xf32> to vector<8x192xf32>
    %16 = arith.negf %15 : vector<8x192xf32>
    %17 = math.exp %16 : vector<8x192xf32>
    %cst_11 = arith.constant 1.000000e+00 : f32
    %18 = vector.broadcast %cst_11 : f32 to vector<8x192xf32>
    %19 = arith.addf %18, %17 : vector<8x192xf32>
    %20 = arith.divf %18, %19 : vector<8x192xf32>
    %21 = vector.extract_strided_slice %14 {offsets = [0, 192], sizes = [8, 64], strides = [1, 1]} : vector<8x256xf32> to vector<8x64xf32>
    %22 = math.tanh %21 : vector<8x64xf32>
    %23 = vector.extract_strided_slice %20 {offsets = [0, 0], sizes = [8, 64], strides = [1, 1]} : vector<8x192xf32> to vector<8x64xf32>
    %24 = vector.extract_strided_slice %20 {offsets = [0, 64], sizes = [8, 64], strides = [1, 1]} : vector<8x192xf32> to vector<8x64xf32>
    %25 = vector.extract_strided_slice %20 {offsets = [0, 128], sizes = [8, 64], strides = [1, 1]} : vector<8x192xf32> to vector<8x64xf32>
    %26 = arith.mulf %24, %11 : vector<8x64xf32>
    %27 = arith.mulf %23, %22 : vector<8x64xf32>
    %28 = arith.addf %26, %27 : vector<8x64xf32>
    %29 = math.tanh %28 : vector<8x64xf32>
    %30 = arith.mulf %25, %29 : vector<8x64xf32>
    %31 = vector.broadcast %9 : vector<1x64xf32> to vector<8x64xf32>
    %32 = arith.mulf %30, %31 : vector<8x64xf32>
    %33 = vector.broadcast %9 : vector<1x64xf32> to vector<8x64xf32>
    %34 = arith.mulf %28, %33 : vector<8x64xf32>
    %c8_12 = arith.constant 8 : index
    %c0_13 = arith.constant 0 : index
    %35 = vector.load %arg5[%c8_12, %c0_13] : memref<64x256xf32, #tpu.memory_space<vmem>>, vector<8x256xf32>
    %cst_14 = arith.constant dense<0.000000e+00> : vector<8x256xf32>
    %36 = tpu.matmul %32, %4, %cst_14 {dimension_numbers = #tpu.dot_dimension_numbers<[1], [0], [0], [1], [0, 0, 1, 1], [], []>} : vector<8x64xf32>, vector<64x256xf32>, vector<8x256xf32> -> vector<8x256xf32>
    %37 = arith.addf %35, %36 : vector<8x256xf32>
    %38 = vector.extract_strided_slice %37 {offsets = [0, 0], sizes = [8, 192], strides = [1, 1]} : vector<8x256xf32> to vector<8x192xf32>
    %39 = arith.negf %38 : vector<8x192xf32>
    %40 = math.exp %39 : vector<8x192xf32>
    %cst_15 = arith.constant 1.000000e+00 : f32
    %41 = vector.broadcast %cst_15 : f32 to vector<8x192xf32>
    %42 = arith.addf %41, %40 : vector<8x192xf32>
    %43 = arith.divf %41, %42 : vector<8x192xf32>
    %44 = vector.extract_strided_slice %37 {offsets = [0, 192], sizes = [8, 64], strides = [1, 1]} : vector<8x256xf32> to vector<8x64xf32>
    %45 = math.tanh %44 : vector<8x64xf32>
    %46 = vector.extract_strided_slice %43 {offsets = [0, 0], sizes = [8, 64], strides = [1, 1]} : vector<8x192xf32> to vector<8x64xf32>
    %47 = vector.extract_strided_slice %43 {offsets = [0, 64], sizes = [8, 64], strides = [1, 1]} : vector<8x192xf32> to vector<8x64xf32>
    %48 = vector.extract_strided_slice %43 {offsets = [0, 128], sizes = [8, 64], strides = [1, 1]} : vector<8x192xf32> to vector<8x64xf32>
    %49 = arith.mulf %47, %34 : vector<8x64xf32>
    %50 = arith.mulf %46, %45 : vector<8x64xf32>
    %51 = arith.addf %49, %50 : vector<8x64xf32>
    %52 = math.tanh %51 : vector<8x64xf32>
    %53 = arith.mulf %48, %52 : vector<8x64xf32>
    %54 = vector.extract_strided_slice %53 {offsets = [0, 32], sizes = [8, 32], strides = [1, 1]} : vector<8x64xf32> to vector<8x32xf32>
    %c0_16 = arith.constant 0 : index
    %c0_17 = arith.constant 0 : index
    %55 = vector.load %arg6[%c0_16, %c0_17] : memref<64x32xf32, #tpu.memory_space<vmem>>, vector<8x32xf32>
    tpu.vector_store %arg6[%c0_16, %c0_17], %54 {strides = array<i32>} : memref<64x32xf32, #tpu.memory_space<vmem>>, vector<8x32xf32>,
    %56 = vector.extract_strided_slice %54 {offsets = [7, 0], sizes = [1, 32], strides = [1, 1]} : vector<8x32xf32> to vector<1x32xf32>
    %c0_18 = arith.constant 0 : index
    %c0_19 = arith.constant 0 : index
    %57 = vector.load %arg7[%c0_18, %c0_19] : memref<8x32xf32, #tpu.memory_space<vmem>>, vector<1x32xf32>
    tpu.vector_store %arg7[%c0_18, %c0_19], %56 {strides = array<i32>} : memref<8x32xf32, #tpu.memory_space<vmem>>, vector<1x32xf32>,
    %c16 = arith.constant 16 : index
    %c0_20 = arith.constant 0 : index
    %58 = vector.load %arg5[%c16, %c0_20] : memref<64x256xf32, #tpu.memory_space<vmem>>, vector<8x256xf32>
    %cst_21 = arith.constant dense<0.000000e+00> : vector<8x256xf32>
    %59 = tpu.matmul %53, %4, %cst_21 {dimension_numbers = #tpu.dot_dimension_numbers<[1], [0], [0], [1], [0, 0, 1, 1], [], []>} : vector<8x64xf32>, vector<64x256xf32>, vector<8x256xf32> -> vector<8x256xf32>
    %60 = arith.addf %58, %59 : vector<8x256xf32>
    %61 = vector.extract_strided_slice %60 {offsets = [0, 0], sizes = [8, 192], strides = [1, 1]} : vector<8x256xf32> to vector<8x192xf32>
    %62 = arith.negf %61 : vector<8x192xf32>
    %63 = math.exp %62 : vector<8x192xf32>
    %cst_22 = arith.constant 1.000000e+00 : f32
    %64 = vector.broadcast %cst_22 : f32 to vector<8x192xf32>
    %65 = arith.addf %64, %63 : vector<8x192xf32>
    %66 = arith.divf %64, %65 : vector<8x192xf32>
    %67 = vector.extract_strided_slice %60 {offsets = [0, 192], sizes = [8, 64], strides = [1, 1]} : vector<8x256xf32> to vector<8x64xf32>
    %68 = math.tanh %67 : vector<8x64xf32>
    %69 = vector.extract_strided_slice %66 {offsets = [0, 0], sizes = [8, 64], strides = [1, 1]} : vector<8x192xf32> to vector<8x64xf32>
    %70 = vector.extract_strided_slice %66 {offsets = [0, 64], sizes = [8, 64], strides = [1, 1]} : vector<8x192xf32> to vector<8x64xf32>
    %71 = vector.extract_strided_slice %66 {offsets = [0, 128], sizes = [8, 64], strides = [1, 1]} : vector<8x192xf32> to vector<8x64xf32>
    %72 = arith.mulf %70, %51 : vector<8x64xf32>
    %73 = arith.mulf %69, %68 : vector<8x64xf32>
    %74 = arith.addf %72, %73 : vector<8x64xf32>
    %75 = math.tanh %74 : vector<8x64xf32>
    %76 = arith.mulf %71, %75 : vector<8x64xf32>
    %77 = vector.extract_strided_slice %76 {offsets = [0, 32], sizes = [8, 32], strides = [1, 1]} : vector<8x64xf32> to vector<8x32xf32>
    %c8_23 = arith.constant 8 : index
    %c0_24 = arith.constant 0 : index
    %78 = vector.load %arg6[%c8_23, %c0_24] : memref<64x32xf32, #tpu.memory_space<vmem>>, vector<8x32xf32>
    tpu.vector_store %arg6[%c8_23, %c0_24], %77 {strides = array<i32>} : memref<64x32xf32, #tpu.memory_space<vmem>>, vector<8x32xf32>,
    %79 = vector.extract_strided_slice %77 {offsets = [7, 0], sizes = [1, 32], strides = [1, 1]} : vector<8x32xf32> to vector<1x32xf32>
    %c1 = arith.constant 1 : index
    %c0_25 = arith.constant 0 : index
    %80 = vector.load %arg7[%c1, %c0_25] : memref<8x32xf32, #tpu.memory_space<vmem>>, vector<1x32xf32>
    tpu.vector_store %arg7[%c1, %c0_25], %79 {strides = array<i32>} : memref<8x32xf32, #tpu.memory_space<vmem>>, vector<1x32xf32>,
    %c24 = arith.constant 24 : index
    %c0_26 = arith.constant 0 : index
    %81 = vector.load %arg5[%c24, %c0_26] : memref<64x256xf32, #tpu.memory_space<vmem>>, vector<8x256xf32>
    %cst_27 = arith.constant dense<0.000000e+00> : vector<8x256xf32>
    %82 = tpu.matmul %76, %4, %cst_27 {dimension_numbers = #tpu.dot_dimension_numbers<[1], [0], [0], [1], [0, 0, 1, 1], [], []>} : vector<8x64xf32>, vector<64x256xf32>, vector<8x256xf32> -> vector<8x256xf32>
    %83 = arith.addf %81, %82 : vector<8x256xf32>
    %84 = vector.extract_strided_slice %83 {offsets = [0, 0], sizes = [8, 192], strides = [1, 1]} : vector<8x256xf32> to vector<8x192xf32>
    %85 = arith.negf %84 : vector<8x192xf32>
    %86 = math.exp %85 : vector<8x192xf32>
    %cst_28 = arith.constant 1.000000e+00 : f32
    %87 = vector.broadcast %cst_28 : f32 to vector<8x192xf32>
    %88 = arith.addf %87, %86 : vector<8x192xf32>
    %89 = arith.divf %87, %88 : vector<8x192xf32>
    %90 = vector.extract_strided_slice %83 {offsets = [0, 192], sizes = [8, 64], strides = [1, 1]} : vector<8x256xf32> to vector<8x64xf32>
    %91 = math.tanh %90 : vector<8x64xf32>
    %92 = vector.extract_strided_slice %89 {offsets = [0, 0], sizes = [8, 64], strides = [1, 1]} : vector<8x192xf32> to vector<8x64xf32>
    %93 = vector.extract_strided_slice %89 {offsets = [0, 64], sizes = [8, 64], strides = [1, 1]} : vector<8x192xf32> to vector<8x64xf32>
    %94 = vector.extract_strided_slice %89 {offsets = [0, 128], sizes = [8, 64], strides = [1, 1]} : vector<8x192xf32> to vector<8x64xf32>
    %95 = arith.mulf %93, %74 : vector<8x64xf32>
    %96 = arith.mulf %92, %91 : vector<8x64xf32>
    %97 = arith.addf %95, %96 : vector<8x64xf32>
    %98 = math.tanh %97 : vector<8x64xf32>
    %99 = arith.mulf %94, %98 : vector<8x64xf32>
    %100 = vector.extract_strided_slice %99 {offsets = [0, 32], sizes = [8, 32], strides = [1, 1]} : vector<8x64xf32> to vector<8x32xf32>
    %c16_29 = arith.constant 16 : index
    %c0_30 = arith.constant 0 : index
    %101 = vector.load %arg6[%c16_29, %c0_30] : memref<64x32xf32, #tpu.memory_space<vmem>>, vector<8x32xf32>
    tpu.vector_store %arg6[%c16_29, %c0_30], %100 {strides = array<i32>} : memref<64x32xf32, #tpu.memory_space<vmem>>, vector<8x32xf32>,
    %102 = vector.extract_strided_slice %100 {offsets = [7, 0], sizes = [1, 32], strides = [1, 1]} : vector<8x32xf32> to vector<1x32xf32>
    %c2 = arith.constant 2 : index
    %c0_31 = arith.constant 0 : index
    %103 = vector.load %arg7[%c2, %c0_31] : memref<8x32xf32, #tpu.memory_space<vmem>>, vector<1x32xf32>
    tpu.vector_store %arg7[%c2, %c0_31], %102 {strides = array<i32>} : memref<8x32xf32, #tpu.memory_space<vmem>>, vector<1x32xf32>,
    %c32 = arith.constant 32 : index
    %c0_32 = arith.constant 0 : index
    %104 = vector.load %arg5[%c32, %c0_32] : memref<64x256xf32, #tpu.memory_space<vmem>>, vector<8x256xf32>
    %cst_33 = arith.constant dense<0.000000e+00> : vector<8x256xf32>
    %105 = tpu.matmul %99, %4, %cst_33 {dimension_numbers = #tpu.dot_dimension_numbers<[1], [0], [0], [1], [0, 0, 1, 1], [], []>} : vector<8x64xf32>, vector<64x256xf32>, vector<8x256xf32> -> vector<8x256xf32>
    %106 = arith.addf %104, %105 : vector<8x256xf32>
    %107 = vector.extract_strided_slice %106 {offsets = [0, 0], sizes = [8, 192], strides = [1, 1]} : vector<8x256xf32> to vector<8x192xf32>
    %108 = arith.negf %107 : vector<8x192xf32>
    %109 = math.exp %108 : vector<8x192xf32>
    %cst_34 = arith.constant 1.000000e+00 : f32
    %110 = vector.broadcast %cst_34 : f32 to vector<8x192xf32>
    %111 = arith.addf %110, %109 : vector<8x192xf32>
    %112 = arith.divf %110, %111 : vector<8x192xf32>
    %113 = vector.extract_strided_slice %106 {offsets = [0, 192], sizes = [8, 64], strides = [1, 1]} : vector<8x256xf32> to vector<8x64xf32>
    %114 = math.tanh %113 : vector<8x64xf32>
    %115 = vector.extract_strided_slice %112 {offsets = [0, 0], sizes = [8, 64], strides = [1, 1]} : vector<8x192xf32> to vector<8x64xf32>
    %116 = vector.extract_strided_slice %112 {offsets = [0, 64], sizes = [8, 64], strides = [1, 1]} : vector<8x192xf32> to vector<8x64xf32>
    %117 = vector.extract_strided_slice %112 {offsets = [0, 128], sizes = [8, 64], strides = [1, 1]} : vector<8x192xf32> to vector<8x64xf32>
    %118 = arith.mulf %116, %97 : vector<8x64xf32>
    %119 = arith.mulf %115, %114 : vector<8x64xf32>
    %120 = arith.addf %118, %119 : vector<8x64xf32>
    %121 = math.tanh %120 : vector<8x64xf32>
    %122 = arith.mulf %117, %121 : vector<8x64xf32>
    %123 = vector.extract_strided_slice %122 {offsets = [0, 32], sizes = [8, 32], strides = [1, 1]} : vector<8x64xf32> to vector<8x32xf32>
    %c24_35 = arith.constant 24 : index
    %c0_36 = arith.constant 0 : index
    %124 = vector.load %arg6[%c24_35, %c0_36] : memref<64x32xf32, #tpu.memory_space<vmem>>, vector<8x32xf32>
    tpu.vector_store %arg6[%c24_35, %c0_36], %123 {strides = array<i32>} : memref<64x32xf32, #tpu.memory_space<vmem>>, vector<8x32xf32>,
    %125 = vector.extract_strided_slice %123 {offsets = [7, 0], sizes = [1, 32], strides = [1, 1]} : vector<8x32xf32> to vector<1x32xf32>
    %c3 = arith.constant 3 : index
    %c0_37 = arith.constant 0 : index
    %126 = vector.load %arg7[%c3, %c0_37] : memref<8x32xf32, #tpu.memory_space<vmem>>, vector<1x32xf32>
    tpu.vector_store %arg7[%c3, %c0_37], %125 {strides = array<i32>} : memref<8x32xf32, #tpu.memory_space<vmem>>, vector<1x32xf32>,
    %c40 = arith.constant 40 : index
    %c0_38 = arith.constant 0 : index
    %127 = vector.load %arg5[%c40, %c0_38] : memref<64x256xf32, #tpu.memory_space<vmem>>, vector<8x256xf32>
    %cst_39 = arith.constant dense<0.000000e+00> : vector<8x256xf32>
    %128 = tpu.matmul %122, %4, %cst_39 {dimension_numbers = #tpu.dot_dimension_numbers<[1], [0], [0], [1], [0, 0, 1, 1], [], []>} : vector<8x64xf32>, vector<64x256xf32>, vector<8x256xf32> -> vector<8x256xf32>
    %129 = arith.addf %127, %128 : vector<8x256xf32>
    %130 = vector.extract_strided_slice %129 {offsets = [0, 0], sizes = [8, 192], strides = [1, 1]} : vector<8x256xf32> to vector<8x192xf32>
    %131 = arith.negf %130 : vector<8x192xf32>
    %132 = math.exp %131 : vector<8x192xf32>
    %cst_40 = arith.constant 1.000000e+00 : f32
    %133 = vector.broadcast %cst_40 : f32 to vector<8x192xf32>
    %134 = arith.addf %133, %132 : vector<8x192xf32>
    %135 = arith.divf %133, %134 : vector<8x192xf32>
    %136 = vector.extract_strided_slice %129 {offsets = [0, 192], sizes = [8, 64], strides = [1, 1]} : vector<8x256xf32> to vector<8x64xf32>
    %137 = math.tanh %136 : vector<8x64xf32>
    %138 = vector.extract_strided_slice %135 {offsets = [0, 0], sizes = [8, 64], strides = [1, 1]} : vector<8x192xf32> to vector<8x64xf32>
    %139 = vector.extract_strided_slice %135 {offsets = [0, 64], sizes = [8, 64], strides = [1, 1]} : vector<8x192xf32> to vector<8x64xf32>
    %140 = vector.extract_strided_slice %135 {offsets = [0, 128], sizes = [8, 64], strides = [1, 1]} : vector<8x192xf32> to vector<8x64xf32>
    %141 = arith.mulf %139, %120 : vector<8x64xf32>
    %142 = arith.mulf %138, %137 : vector<8x64xf32>
    %143 = arith.addf %141, %142 : vector<8x64xf32>
    %144 = math.tanh %143 : vector<8x64xf32>
    %145 = arith.mulf %140, %144 : vector<8x64xf32>
    %146 = vector.extract_strided_slice %145 {offsets = [0, 32], sizes = [8, 32], strides = [1, 1]} : vector<8x64xf32> to vector<8x32xf32>
    %c32_41 = arith.constant 32 : index
    %c0_42 = arith.constant 0 : index
    %147 = vector.load %arg6[%c32_41, %c0_42] : memref<64x32xf32, #tpu.memory_space<vmem>>, vector<8x32xf32>
    tpu.vector_store %arg6[%c32_41, %c0_42], %146 {strides = array<i32>} : memref<64x32xf32, #tpu.memory_space<vmem>>, vector<8x32xf32>,
    %148 = vector.extract_strided_slice %146 {offsets = [7, 0], sizes = [1, 32], strides = [1, 1]} : vector<8x32xf32> to vector<1x32xf32>
    %c4 = arith.constant 4 : index
    %c0_43 = arith.constant 0 : index
    %149 = vector.load %arg7[%c4, %c0_43] : memref<8x32xf32, #tpu.memory_space<vmem>>, vector<1x32xf32>
    tpu.vector_store %arg7[%c4, %c0_43], %148 {strides = array<i32>} : memref<8x32xf32, #tpu.memory_space<vmem>>, vector<1x32xf32>,
    %c48 = arith.constant 48 : index
    %c0_44 = arith.constant 0 : index
    %150 = vector.load %arg5[%c48, %c0_44] : memref<64x256xf32, #tpu.memory_space<vmem>>, vector<8x256xf32>
    %cst_45 = arith.constant dense<0.000000e+00> : vector<8x256xf32>
    %151 = tpu.matmul %145, %4, %cst_45 {dimension_numbers = #tpu.dot_dimension_numbers<[1], [0], [0], [1], [0, 0, 1, 1], [], []>} : vector<8x64xf32>, vector<64x256xf32>, vector<8x256xf32> -> vector<8x256xf32>
    %152 = arith.addf %150, %151 : vector<8x256xf32>
    %153 = vector.extract_strided_slice %152 {offsets = [0, 0], sizes = [8, 192], strides = [1, 1]} : vector<8x256xf32> to vector<8x192xf32>
    %154 = arith.negf %153 : vector<8x192xf32>
    %155 = math.exp %154 : vector<8x192xf32>
    %cst_46 = arith.constant 1.000000e+00 : f32
    %156 = vector.broadcast %cst_46 : f32 to vector<8x192xf32>
    %157 = arith.addf %156, %155 : vector<8x192xf32>
    %158 = arith.divf %156, %157 : vector<8x192xf32>
    %159 = vector.extract_strided_slice %152 {offsets = [0, 192], sizes = [8, 64], strides = [1, 1]} : vector<8x256xf32> to vector<8x64xf32>
    %160 = math.tanh %159 : vector<8x64xf32>
    %161 = vector.extract_strided_slice %158 {offsets = [0, 0], sizes = [8, 64], strides = [1, 1]} : vector<8x192xf32> to vector<8x64xf32>
    %162 = vector.extract_strided_slice %158 {offsets = [0, 64], sizes = [8, 64], strides = [1, 1]} : vector<8x192xf32> to vector<8x64xf32>
    %163 = vector.extract_strided_slice %158 {offsets = [0, 128], sizes = [8, 64], strides = [1, 1]} : vector<8x192xf32> to vector<8x64xf32>
    %164 = arith.mulf %162, %143 : vector<8x64xf32>
    %165 = arith.mulf %161, %160 : vector<8x64xf32>
    %166 = arith.addf %164, %165 : vector<8x64xf32>
    %167 = math.tanh %166 : vector<8x64xf32>
    %168 = arith.mulf %163, %167 : vector<8x64xf32>
    %169 = vector.extract_strided_slice %168 {offsets = [0, 32], sizes = [8, 32], strides = [1, 1]} : vector<8x64xf32> to vector<8x32xf32>
    %c40_47 = arith.constant 40 : index
    %c0_48 = arith.constant 0 : index
    %170 = vector.load %arg6[%c40_47, %c0_48] : memref<64x32xf32, #tpu.memory_space<vmem>>, vector<8x32xf32>
    tpu.vector_store %arg6[%c40_47, %c0_48], %169 {strides = array<i32>} : memref<64x32xf32, #tpu.memory_space<vmem>>, vector<8x32xf32>,
    %171 = vector.extract_strided_slice %169 {offsets = [7, 0], sizes = [1, 32], strides = [1, 1]} : vector<8x32xf32> to vector<1x32xf32>
    %c5 = arith.constant 5 : index
    %c0_49 = arith.constant 0 : index
    %172 = vector.load %arg7[%c5, %c0_49] : memref<8x32xf32, #tpu.memory_space<vmem>>, vector<1x32xf32>
    tpu.vector_store %arg7[%c5, %c0_49], %171 {strides = array<i32>} : memref<8x32xf32, #tpu.memory_space<vmem>>, vector<1x32xf32>,
    %c56 = arith.constant 56 : index
    %c0_50 = arith.constant 0 : index
    %173 = vector.load %arg5[%c56, %c0_50] : memref<64x256xf32, #tpu.memory_space<vmem>>, vector<8x256xf32>
    %cst_51 = arith.constant dense<0.000000e+00> : vector<8x256xf32>
    %174 = tpu.matmul %168, %4, %cst_51 {dimension_numbers = #tpu.dot_dimension_numbers<[1], [0], [0], [1], [0, 0, 1, 1], [], []>} : vector<8x64xf32>, vector<64x256xf32>, vector<8x256xf32> -> vector<8x256xf32>
    %175 = arith.addf %173, %174 : vector<8x256xf32>
    %176 = vector.extract_strided_slice %175 {offsets = [0, 0], sizes = [8, 192], strides = [1, 1]} : vector<8x256xf32> to vector<8x192xf32>
    %177 = arith.negf %176 : vector<8x192xf32>
    %178 = math.exp %177 : vector<8x192xf32>
    %cst_52 = arith.constant 1.000000e+00 : f32
    %179 = vector.broadcast %cst_52 : f32 to vector<8x192xf32>
    %180 = arith.addf %179, %178 : vector<8x192xf32>
    %181 = arith.divf %179, %180 : vector<8x192xf32>
    %182 = vector.extract_strided_slice %175 {offsets = [0, 192], sizes = [8, 64], strides = [1, 1]} : vector<8x256xf32> to vector<8x64xf32>
    %183 = math.tanh %182 : vector<8x64xf32>
    %184 = vector.extract_strided_slice %181 {offsets = [0, 0], sizes = [8, 64], strides = [1, 1]} : vector<8x192xf32> to vector<8x64xf32>
    %185 = vector.extract_strided_slice %181 {offsets = [0, 64], sizes = [8, 64], strides = [1, 1]} : vector<8x192xf32> to vector<8x64xf32>
    %186 = vector.extract_strided_slice %181 {offsets = [0, 128], sizes = [8, 64], strides = [1, 1]} : vector<8x192xf32> to vector<8x64xf32>
    %187 = arith.mulf %185, %166 : vector<8x64xf32>
    %188 = arith.mulf %184, %183 : vector<8x64xf32>
    %189 = arith.addf %187, %188 : vector<8x64xf32>
    %190 = math.tanh %189 : vector<8x64xf32>
    %191 = arith.mulf %186, %190 : vector<8x64xf32>
    %192 = vector.extract_strided_slice %191 {offsets = [0, 32], sizes = [8, 32], strides = [1, 1]} : vector<8x64xf32> to vector<8x32xf32>
    %c48_53 = arith.constant 48 : index
    %c0_54 = arith.constant 0 : index
    %193 = vector.load %arg6[%c48_53, %c0_54] : memref<64x32xf32, #tpu.memory_space<vmem>>, vector<8x32xf32>
    tpu.vector_store %arg6[%c48_53, %c0_54], %192 {strides = array<i32>} : memref<64x32xf32, #tpu.memory_space<vmem>>, vector<8x32xf32>,
    %194 = vector.extract_strided_slice %192 {offsets = [7, 0], sizes = [1, 32], strides = [1, 1]} : vector<8x32xf32> to vector<1x32xf32>
    %c6 = arith.constant 6 : index
    %c0_55 = arith.constant 0 : index
    %195 = vector.load %arg7[%c6, %c0_55] : memref<8x32xf32, #tpu.memory_space<vmem>>, vector<1x32xf32>
    tpu.vector_store %arg7[%c6, %c0_55], %194 {strides = array<i32>} : memref<8x32xf32, #tpu.memory_space<vmem>>, vector<1x32xf32>,
    %c56_56 = arith.constant 56 : index
    %c0_57 = arith.constant 0 : index
    %196 = vector.load %arg5[%c56_56, %c0_57] : memref<64x256xf32, #tpu.memory_space<vmem>>, vector<8x256xf32>
    %cst_58 = arith.constant dense<0.000000e+00> : vector<8x256xf32>
    %197 = tpu.matmul %191, %4, %cst_58 {dimension_numbers = #tpu.dot_dimension_numbers<[1], [0], [0], [1], [0, 0, 1, 1], [], []>} : vector<8x64xf32>, vector<64x256xf32>, vector<8x256xf32> -> vector<8x256xf32>
    %198 = arith.addf %196, %197 : vector<8x256xf32>
    %199 = vector.extract_strided_slice %198 {offsets = [0, 0], sizes = [8, 192], strides = [1, 1]} : vector<8x256xf32> to vector<8x192xf32>
    %200 = arith.negf %199 : vector<8x192xf32>
    %201 = math.exp %200 : vector<8x192xf32>
    %cst_59 = arith.constant 1.000000e+00 : f32
    %202 = vector.broadcast %cst_59 : f32 to vector<8x192xf32>
    %203 = arith.addf %202, %201 : vector<8x192xf32>
    %204 = arith.divf %202, %203 : vector<8x192xf32>
    %205 = vector.extract_strided_slice %198 {offsets = [0, 192], sizes = [8, 64], strides = [1, 1]} : vector<8x256xf32> to vector<8x64xf32>
    %206 = math.tanh %205 : vector<8x64xf32>
    %207 = vector.extract_strided_slice %204 {offsets = [0, 0], sizes = [8, 64], strides = [1, 1]} : vector<8x192xf32> to vector<8x64xf32>
    %208 = vector.extract_strided_slice %204 {offsets = [0, 64], sizes = [8, 64], strides = [1, 1]} : vector<8x192xf32> to vector<8x64xf32>
    %209 = vector.extract_strided_slice %204 {offsets = [0, 128], sizes = [8, 64], strides = [1, 1]} : vector<8x192xf32> to vector<8x64xf32>
    %210 = arith.mulf %208, %189 : vector<8x64xf32>
    %211 = arith.mulf %207, %206 : vector<8x64xf32>
    %212 = arith.addf %210, %211 : vector<8x64xf32>
    %213 = math.tanh %212 : vector<8x64xf32>
    %214 = arith.mulf %209, %213 : vector<8x64xf32>
    %215 = vector.extract_strided_slice %214 {offsets = [0, 32], sizes = [8, 32], strides = [1, 1]} : vector<8x64xf32> to vector<8x32xf32>
    %c56_60 = arith.constant 56 : index
    %c0_61 = arith.constant 0 : index
    %216 = vector.load %arg6[%c56_60, %c0_61] : memref<64x32xf32, #tpu.memory_space<vmem>>, vector<8x32xf32>
    tpu.vector_store %arg6[%c56_60, %c0_61], %215 {strides = array<i32>} : memref<64x32xf32, #tpu.memory_space<vmem>>, vector<8x32xf32>,
    %217 = vector.extract_strided_slice %215 {offsets = [7, 0], sizes = [1, 32], strides = [1, 1]} : vector<8x32xf32> to vector<1x32xf32>
    %c7 = arith.constant 7 : index
    %c0_62 = arith.constant 0 : index
    %218 = vector.load %arg7[%c7, %c0_62] : memref<8x32xf32, #tpu.memory_space<vmem>>, vector<1x32xf32>
    tpu.vector_store %arg7[%c7, %c0_62], %217 {strides = array<i32>} : memref<8x32xf32, #tpu.memory_space<vmem>>, vector<1x32xf32>,
    %c0_63 = arith.constant 0 : index
    %c0_64 = arith.constant 0 : index
    %219 = vector.load %arg2[%c0_63, %c0_64] : memref<72x128xf32, #tpu.memory_space<vmem>>, vector<32x128xf32>
    %c32_65 = arith.constant 32 : index
    %c0_66 = arith.constant 0 : index
    %220 = vector.load %arg2[%c32_65, %c0_66] : memref<72x128xf32, #tpu.memory_space<vmem>>, vector<1x128xf32>
    %c40_67 = arith.constant 40 : index
    %c0_68 = arith.constant 0 : index
    %221 = vector.load %arg2[%c40_67, %c0_68] : memref<72x128xf32, #tpu.memory_space<vmem>>, vector<32x128xf32>
    %222 = vector.extract_strided_slice %221 {offsets = [0, 0], sizes = [32, 32], strides = [1, 1]} : vector<32x128xf32> to vector<32x32xf32>
    %c0_69 = arith.constant 0 : index
    %c0_70 = arith.constant 0 : index
    %223 = vector.load %arg6[%c0_69, %c0_70] : memref<64x32xf32, #tpu.memory_space<vmem>>, vector<64x32xf32>
    %224 = vector.extract_strided_slice %214 {offsets = [0, 32], sizes = [8, 32], strides = [1, 1]} : vector<8x64xf32> to vector<8x32xf32>
    %225 = vector.extract_strided_slice %219 {offsets = [0, 0], sizes = [32, 64], strides = [1, 1]} : vector<32x128xf32> to vector<32x64xf32>
    %cst_71 = arith.constant dense<0.000000e+00> : vector<64x64xf32>
    %226 = tpu.matmul %223, %225, %cst_71 {dimension_numbers = #tpu.dot_dimension_numbers<[1], [0], [0], [1], [0, 0, 1, 1], [], []>} : vector<64x32xf32>, vector<32x64xf32>, vector<64x64xf32> -> vector<64x64xf32>
    %227 = vector.extract_strided_slice %220 {offsets = [0, 0], sizes = [1, 64], strides = [1, 1]} : vector<1x128xf32> to vector<1x64xf32>
    %228 = vector.broadcast %227 : vector<1x64xf32> to vector<64x64xf32>
    %229 = arith.addf %226, %228 : vector<64x64xf32>
    %230 = vector.extract_strided_slice %219 {offsets = [0, 64], sizes = [32, 32], strides = [1, 1]} : vector<32x128xf32> to vector<32x32xf32>
    %cst_72 = arith.constant dense<0.000000e+00> : vector<8x32xf32>
    %231 = tpu.matmul %224, %230, %cst_72 {dimension_numbers = #tpu.dot_dimension_numbers<[1], [0], [0], [1], [0, 0, 1, 1], [], []>} : vector<8x32xf32>, vector<32x32xf32>, vector<8x32xf32> -> vector<8x32xf32>
    %232 = vector.extract_strided_slice %220 {offsets = [0, 64], sizes = [1, 32], strides = [1, 1]} : vector<1x128xf32> to vector<1x32xf32>
    %233 = vector.broadcast %232 : vector<1x32xf32> to vector<8x32xf32>
    %234 = arith.addf %231, %233 : vector<8x32xf32>
    %cst_73 = arith.constant 0.353553385 : f32
    %235 = vector.broadcast %cst_73 : f32 to vector<8x32xf32>
    %236 = arith.mulf %234, %235 : vector<8x32xf32>
    %237 = vector.extract_strided_slice %229 {offsets = [0, 0], sizes = [64, 32], strides = [1, 1]} : vector<64x64xf32> to vector<64x32xf32>
    %238 = vector.shape_cast %237 : vector<64x32xf32> to vector<8x8x32xf32>
    %239 = vector.extract_strided_slice %229 {offsets = [0, 32], sizes = [64, 32], strides = [1, 1]} : vector<64x64xf32> to vector<64x32xf32>
    %240 = vector.shape_cast %239 : vector<64x32xf32> to vector<8x8x32xf32>
    %241 = vector.shape_cast %236 : vector<8x32xf32> to vector<1x8x32xf32>
    %242 = vector.broadcast %241 : vector<1x8x32xf32> to vector<8x8x32xf32>
    %243 = arith.mulf %242, %238 : vector<8x8x32xf32>
    %244 = vector.shape_cast %243 : vector<8x8x32xf32> to vector<64x32xf32>
    %cst_74 = arith.constant dense<0.000000e+00> : vector<64x32xf32>
    %245 = tpu.matmul %244, %222, %cst_74 {dimension_numbers = #tpu.dot_dimension_numbers<[1], [0], [0], [1], [0, 0, 1, 1], [], []>} : vector<64x32xf32>, vector<32x32xf32>, vector<64x32xf32> -> vector<64x32xf32>
    %246 = vector.shape_cast %245 : vector<64x32xf32> to vector<8x8x32xf32>
    %cst_75 = arith.constant dense<0xFF800000> : vector<8x32xf32>
    %247 = vector.multi_reduction <maximumf>, %246, %cst_75 [0] : vector<8x8x32xf32> to vector<8x32xf32>
    %248 = vector.shape_cast %247 : vector<8x32xf32> to vector<1x8x32xf32>
    %249 = vector.broadcast %248 : vector<1x8x32xf32> to vector<8x8x32xf32>
    %250 = arith.subf %246, %249 : vector<8x8x32xf32>
    %251 = math.exp %250 : vector<8x8x32xf32>
    %cst_76 = arith.constant dense<0.000000e+00> : vector<8x32xf32>
    %252 = vector.multi_reduction <add>, %251, %cst_76 [0] : vector<8x8x32xf32> to vector<8x32xf32>
    %253 = vector.shape_cast %252 : vector<8x32xf32> to vector<1x8x32xf32>
    %254 = vector.broadcast %253 : vector<1x8x32xf32> to vector<8x8x32xf32>
    %255 = arith.divf %251, %254 : vector<8x8x32xf32>
    %256 = arith.mulf %255, %240 : vector<8x8x32xf32>
    %cst_77 = arith.constant dense<0.000000e+00> : vector<8x32xf32>
    %257 = vector.multi_reduction <add>, %256, %cst_77 [0] : vector<8x8x32xf32> to vector<8x32xf32>
    %258 = vector.extract_strided_slice %219 {offsets = [0, 96], sizes = [32, 32], strides = [1, 1]} : vector<32x128xf32> to vector<32x32xf32>
    %cst_78 = arith.constant dense<0.000000e+00> : vector<8x32xf32>
    %259 = tpu.matmul %257, %258, %cst_78 {dimension_numbers = #tpu.dot_dimension_numbers<[1], [0], [0], [1], [0, 0, 1, 1], [], []>} : vector<8x32xf32>, vector<32x32xf32>, vector<8x32xf32> -> vector<8x32xf32>
    %260 = vector.extract_strided_slice %220 {offsets = [0, 96], sizes = [1, 32], strides = [1, 1]} : vector<1x128xf32> to vector<1x32xf32>
    %261 = vector.broadcast %260 : vector<1x32xf32> to vector<8x32xf32>
    %262 = arith.addf %259, %261 : vector<8x32xf32>
    %c0_79 = arith.constant 0 : index
    %c0_80 = arith.constant 0 : index
    %263 = vector.load %arg7[%c0_79, %c0_80] : memref<8x32xf32, #tpu.memory_space<vmem>>, vector<8x32xf32>
    %264 = arith.addf %263, %262 : vector<8x32xf32>
    %cst_81 = arith.constant dense<0.000000e+00> : vector<8xf32>
    %265 = vector.multi_reduction <add>, %264, %cst_81 [1] : vector<8x32xf32> to vector<8xf32>
    %266 = vector.shape_cast %265 : vector<8xf32> to vector<8x1xf32>
    %cst_82 = arith.constant 3.200000e+01 : f32
    %267 = vector.broadcast %cst_82 : f32 to vector<8x1xf32>
    %268 = arith.divf %266, %267 : vector<8x1xf32>
    %269 = vector.broadcast %268 : vector<8x1xf32> to vector<8x32xf32>
    %270 = arith.subf %264, %269 : vector<8x32xf32>
    %271 = arith.mulf %270, %270 : vector<8x32xf32>
    %cst_83 = arith.constant dense<0.000000e+00> : vector<8xf32>
    %272 = vector.multi_reduction <add>, %271, %cst_83 [1] : vector<8x32xf32> to vector<8xf32>
    %273 = vector.shape_cast %272 : vector<8xf32> to vector<8x1xf32>
    %cst_84 = arith.constant 3.200000e+01 : f32
    %274 = vector.broadcast %cst_84 : f32 to vector<8x1xf32>
    %275 = arith.divf %273, %274 : vector<8x1xf32>
    %276 = vector.broadcast %268 : vector<8x1xf32> to vector<8x32xf32>
    %277 = arith.subf %264, %276 : vector<8x32xf32>
    %cst_85 = arith.constant 9.99999974E-6 : f32
    %278 = vector.broadcast %cst_85 : f32 to vector<8x1xf32>
    %279 = arith.addf %275, %278 : vector<8x1xf32>
    %280 = math.rsqrt %279 : vector<8x1xf32>
    %281 = vector.broadcast %280 : vector<8x1xf32> to vector<8x32xf32>
    %282 = arith.mulf %277, %281 : vector<8x32xf32>
    %c0_86 = arith.constant 0 : index
    %c0_87 = arith.constant 0 : index
    %283 = vector.load %arg3[%c0_86, %c0_87] : memref<72x32xf32, #tpu.memory_space<vmem>>, vector<1x32xf32>
    %284 = vector.broadcast %283 : vector<1x32xf32> to vector<8x32xf32>
    %285 = arith.mulf %282, %284 : vector<8x32xf32>
    %c1_88 = arith.constant 1 : index
    %c0_89 = arith.constant 0 : index
    %286 = vector.load %arg3[%c1_88, %c0_89] : memref<72x32xf32, #tpu.memory_space<vmem>>, vector<1x32xf32>
    %287 = vector.broadcast %286 : vector<1x32xf32> to vector<8x32xf32>
    %288 = arith.addf %285, %287 : vector<8x32xf32>
    %c8_90 = arith.constant 8 : index
    %c0_91 = arith.constant 0 : index
    %289 = vector.load %arg3[%c8_90, %c0_91] : memref<72x32xf32, #tpu.memory_space<vmem>>, vector<32x32xf32>
    %cst_92 = arith.constant dense<0.000000e+00> : vector<8x32xf32>
    %290 = tpu.matmul %288, %289, %cst_92 {dimension_numbers = #tpu.dot_dimension_numbers<[1], [0], [0], [1], [0, 0, 1, 1], [], []>} : vector<8x32xf32>, vector<32x32xf32>, vector<8x32xf32> -> vector<8x32xf32>
    %c2_93 = arith.constant 2 : index
    %c0_94 = arith.constant 0 : index
    %291 = vector.load %arg3[%c2_93, %c0_94] : memref<72x32xf32, #tpu.memory_space<vmem>>, vector<1x32xf32>
    %292 = vector.broadcast %291 : vector<1x32xf32> to vector<8x32xf32>
    %293 = arith.addf %290, %292 : vector<8x32xf32>
    %cst_95 = arith.constant 0.000000e+00 : f32
    %294 = vector.broadcast %cst_95 : f32 to vector<8x32xf32>
    %295 = arith.maximumf %293, %294 : vector<8x32xf32>
    %c40_96 = arith.constant 40 : index
    %c0_97 = arith.constant 0 : index
    %296 = vector.load %arg3[%c40_96, %c0_97] : memref<72x32xf32, #tpu.memory_space<vmem>>, vector<32x32xf32>
    %cst_98 = arith.constant dense<0.000000e+00> : vector<8x32xf32>
    %297 = tpu.matmul %295, %296, %cst_98 {dimension_numbers = #tpu.dot_dimension_numbers<[1], [0], [0], [1], [0, 0, 1, 1], [], []>} : vector<8x32xf32>, vector<32x32xf32>, vector<8x32xf32> -> vector<8x32xf32>
    %c3_99 = arith.constant 3 : index
    %c0_100 = arith.constant 0 : index
    %298 = vector.load %arg3[%c3_99, %c0_100] : memref<72x32xf32, #tpu.memory_space<vmem>>, vector<1x32xf32>
    %299 = vector.broadcast %298 : vector<1x32xf32> to vector<8x32xf32>
    %300 = arith.addf %297, %299 : vector<8x32xf32>
    %301 = vector.extract_strided_slice %300 {offsets = [0, 0], sizes = [8, 1], strides = [1, 1]} : vector<8x32xf32> to vector<8x1xf32>
    %c0_101 = arith.constant 0 : index
    %c0_102 = arith.constant 0 : index
    %302 = vector.load %arg4[%c0_101, %c0_102] : memref<8x1xf32, #tpu.memory_space<vmem>>, vector<8x1xf32>
    tpu.vector_store %arg4[%c0_101, %c0_102], %301 {strides = array<i32>} : memref<8x1xf32, #tpu.memory_space<vmem>>, vector<8x1xf32>,
    return
  }
}

</mosaic_0001>

<llo_original>
// kernel: forecaster_forward.1
$region0: #{forecaster_forward.1}
  #allocation0 [shape = 'u32[]', space=smem, size = 0x4, offset = 0x4, fixed_abs, tag = 'smem constant byte address 0x4 - core index']
  #allocation1 [shape = 'u32[72,128]{1,0:T(1,128)}', space=vmem, size = 0x9000, scoped, tag = 'internal scratch']
  #allocation2 [shape = 'f32[64,256]{1,0:T(8,128)}', space=vmem, size = 0x10000, scoped, tag = 'scratch operand']
  #allocation3 [shape = 'f32[64,32]{1,0:T(8,128)}', space=vmem, size = 0x8000, scoped, tag = 'scratch operand']
  #allocation4 [shape = 'f32[8,32]{1,0:T(8,128)}', space=vmem, size = 0x1000, scoped, tag = 'scratch operand']
  %s0 = inlined_call_operand.vmem [shape: f32[64,5], index: 0, kind: input, shape index: {}]
  %s1 = inlined_call_operand.vmem [shape: f32[72,256], index: 1, kind: input, shape index: {}]
  %s2 = inlined_call_operand.vmem [shape: f32[72,128], index: 2, kind: input, shape index: {}]
  %s3 = inlined_call_operand.vmem [shape: f32[72,32], index: 3, kind: input, shape index: {}]
  %s4 = inlined_call_operand.vmem [shape: f32[8,1], index: 4, kind: output, shape index: {}]
  %s5 = sld [smem:[#allocation0]]
  $region26: #{forecaster_forward.1} parent=0
    _
  %s7 = ssub.s32 1, %s5
  %s8 = scalar_select 0, %s7, %s5
  // Predicated region
  $region2: #{forecaster_forward.1} parent=0 // pred_check
    _
  $region3: #{forecaster_forward.1} parent=0 // pred_check_branch
    %10 = sbr.rel (0) target = $region5
  $region4: #{forecaster_forward.1} parent=0 // pred_region
    _
  $region5: #{forecaster_forward.1} parent=0 // pred_fallthru
    _
  // Predicated region
  $region6: #{forecaster_forward.1} parent=0 // pred_check
    _
  $region7: #{forecaster_forward.1} parent=0 // pred_check_branch
    %12 = sbr.rel (0) target = $region9
  $region8: #{forecaster_forward.1} parent=0 // pred_region
    _
  $region9: #{forecaster_forward.1} parent=0 // pred_fallthru
    _
  // Predicated region
  $region10: #{forecaster_forward.1} parent=0 // pred_check
    _
  $region11: #{forecaster_forward.1} parent=0 // pred_check_branch
    %14 = sbr.rel (0) target = $region13
  $region12: #{forecaster_forward.1} parent=0 // pred_region
    _
  $region13: #{forecaster_forward.1} parent=0 // pred_fallthru
    _
  // Predicated region
  $region14: #{forecaster_forward.1} parent=0 // pred_check
    _
  $region15: #{forecaster_forward.1} parent=0 // pred_check_branch
    %16 = sbr.rel (0) target = $region17
  $region16: #{forecaster_forward.1} parent=0 // pred_region
    _
  $region17: #{forecaster_forward.1} parent=0 // pred_fallthru
    _
  %v17 = vld [vmem:[%s0] sm:$0xff]
  %v18 = vld [vmem:[%s0 + $0x8] sm:$0xff]
  %v19 = vld [vmem:[%s0 + $0x10] sm:$0xff]
  %v20 = vld [vmem:[%s0 + $0x18] sm:$0xff]
  %v21 = vld [vmem:[%s0 + $0x20] sm:$0xff]
  %v22 = vld [vmem:[%s0 + $0x28] sm:$0xff]
  %v23 = vld [vmem:[%s0 + $0x30] sm:$0xff]
  %v24 = vld [vmem:[%s0 + $0x38] sm:$0xff]
  %v25 = vld [vmem:[%s1] sm:$0x1f]
  %v26 = vld [vmem:[%s1 + $0x8] sm:$0x1f]
  %vm27 = vcmask 39936
  %v29 = vsel %vm27, %v17, 0
  %v32 = vsel %vm27, %v18, 0
  %v35 = vsel %vm27, %v19, 0
  %v38 = vsel %vm27, %v20, 0
  %v41 = vsel %vm27, %v21, 0
  %v44 = vsel %vm27, %v22, 0
  %v47 = vsel %vm27, %v23, 0
  %v50 = vsel %vm27, %v24, 0
  %vm52 = vcmask 1044480
  %v54 = vsel %vm52, %v25, 0
  %v57 = vsel %vm52, %v26, 0
  %59 = vmatpush.msra.mxu0 0.0
  %60 = vmatpush.msra.mxu0 0.0
  %61 = vmatpush.msra.mxu0 0.0
  %62 = vmatpush.msra.mxu0 0.0
  %63 = vmatpush.msra.mxu0 0.0
  %64 = vmatpush.msra.mxu0 0.0
  %65 = vmatpush.msra.mxu0 0.0
  %66 = vmatpush.msra.mxu0 0.0
  %67 = vmatpush.msra.mxu0 0.0
  %68 = vmatpush.msra.mxu0 0.0
  %69 = vmatpush.msra.mxu0 0.0
  %70 = vmatpush.msra.mxu0 0.0
  %71 = vmatpush.msra.mxu0 0.0
  %72 = vmatpush.msra.mxu0 0.0
  %73 = vmatpush.msra.mxu0 0.0
  %74 = vmatpush.msra.mxu0 %v54
  %75 = vmatmul.f32.gmra.mxu0 %v29
  %v76 = vpop.f32.mrf.mxu0
  %v77 = vadd.f32 0.0, %v76
  %78 = vmatmul.f32.gmra.mxu0 %v32
  %v79 = vpop.f32.mrf.mxu0
  %v80 = vadd.f32 0.0, %v79
  %81 = vmatmul.f32.gmra.mxu0 %v35
  %v82 = vpop.f32.mrf.mxu0
  %v83 = vadd.f32 0.0, %v82
  %84 = vmatmul.f32.gmra.mxu0 %v38
  %v85 = vpop.f32.mrf.mxu0
  %v86 = vadd.f32 0.0, %v85
  %87 = vmatmul.f32.gmra.mxu0 %v41
  %v88 = vpop.f32.mrf.mxu0
  %v89 = vadd.f32 0.0, %v88
  %90 = vmatmul.f32.gmra.mxu0 %v44
  %v91 = vpop.f32.mrf.mxu0
  %v92 = vadd.f32 0.0, %v91
  %93 = vmatmul.f32.gmra.mxu0 %v47
  %v94 = vpop.f32.mrf.mxu0
  %v95 = vadd.f32 0.0, %v94
  %96 = vmatmul.f32.gmra.mxu0 %v50
  %v97 = vpop.f32.mrf.mxu0
  %v98 = vadd.f32 0.0, %v97
  %99 = vdwg.mxu0
  %100 = vmatpush.msra.mxu0 0.0
  %101 = vmatpush.msra.mxu0 0.0
  %102 = vmatpush.msra.mxu0 0.0
  %103 = vmatpush.msra.mxu0 0.0
  %104 = vmatpush.msra.mxu0 0.0
  %105 = vmatpush.msra.mxu0 0.0
  %106 = vmatpush.msra.mxu0 0.0
  %107 = vmatpush.msra.mxu0 0.0
  %108 = vmatpush.msra.mxu0 0.0
  %109 = vmatpush.msra.mxu0 0.0
  %110 = vmatpush.msra.mxu0 0.0
  %111 = vmatpush.msra.mxu0 0.0
  %112 = vmatpush.msra.mxu0 0.0
  %113 = vmatpush.msra.mxu0 0.0
  %114 = vmatpush.msra.mxu0 0.0
  %115 = vmatpush.msra.mxu0 %v57
  %116 = vmatmul.f32.gmra.mxu0 %v29
  %v117 = vpop.f32.mrf.mxu0
  %v118 = vadd.f32 0.0, %v117
  %119 = vmatmul.f32.gmra.mxu0 %v32
  %v120 = vpop.f32.mrf.mxu0
  %v121 = vadd.f32 0.0, %v120
  %122 = vmatmul.f32.gmra.mxu0 %v35
  %v123 = vpop.f32.mrf.mxu0
  %v124 = vadd.f32 0.0, %v123
  %125 = vmatmul.f32.gmra.mxu0 %v38
  %v126 = vpop.f32.mrf.mxu0
  %v127 = vadd.f32 0.0, %v126
  %128 = vmatmul.f32.gmra.mxu0 %v41
  %v129 = vpop.f32.mrf.mxu0
  %v130 = vadd.f32 0.0, %v129
  %131 = vmatmul.f32.gmra.mxu0 %v44
  %v132 = vpop.f32.mrf.mxu0
  %v133 = vadd.f32 0.0, %v132
  %134 = vmatmul.f32.gmra.mxu0 %v47
  %v135 = vpop.f32.mrf.mxu0
  %v136 = vadd.f32 0.0, %v135
  %137 = vmatmul.f32.gmra.mxu0 %v50
  %v138 = vpop.f32.mrf.mxu0
  %v139 = vadd.f32 0.0, %v138
  %140 = vdwg.mxu0
  %141 = vst [vmem:[#allocation2] sm:$0xff] %v77
  %142 = vst [vmem:[#allocation2 + $0x8] sm:$0xff] %v118
  %143 = vst [vmem:[#allocation2 + $0x10] sm:$0xff] %v80
  %144 = vst [vmem:[#allocation2 + $0x18] sm:$0xff] %v121
  %145 = vst [vmem:[#allocation2 + $0x20] sm:$0xff] %v83
  %146 = vst [vmem:[#allocation2 + $0x28] sm:$0xff] %v124
  %147 = vst [vmem:[#allocation2 + $0x30] sm:$0xff] %v86
  %148 = vst [vmem:[#allocation2 + $0x38] sm:$0xff] %v127
  %149 = vst [vmem:[#allocation2 + $0x40] sm:$0xff] %v89
  %150 = vst [vmem:[#allocation2 + $0x48] sm:$0xff] %v130
  %151 = vst [vmem:[#allocation2 + $0x50] sm:$0xff] %v92
  %152 = vst [vmem:[#allocation2 + $0x58] sm:$0xff] %v133
  %153 = vst [vmem:[#allocation2 + $0x60] sm:$0xff] %v95
  %154 = vst [vmem:[#allocation2 + $0x68] sm:$0xff] %v136
  %155 = vst [vmem:[#allocation2 + $0x70] sm:$0xff] %v98
  %156 = vst [vmem:[#allocation2 + $0x78] sm:$0xff] %v139
  %v157 = vld [vmem:[%s1 + $0x10] sm:$0xff]
  %v158 = vld [vmem:[%s1 + $0x18] sm:$0xff]
  %v159 = vld [vmem:[%s1 + $0x20] sm:$0xff]
  %v160 = vld [vmem:[%s1 + $0x28] sm:$0xff]
  %v161 = vld [vmem:[%s1 + $0x30] sm:$0xff]
  %v162 = vld [vmem:[%s1 + $0x38] sm:$0xff]
  %v163 = vld [vmem:[%s1 + $0x40] sm:$0xff]
  %v164 = vld [vmem:[%s1 + $0x48] sm:$0xff]
  %v165 = vld [vmem:[%s1 + $0x50] sm:$0xff]
  %v166 = vld [vmem:[%s1 + $0x58] sm:$0xff]
  %v167 = vld [vmem:[%s1 + $0x60] sm:$0xff]
  %v168 = vld [vmem:[%s1 + $0x68] sm:$0xff]
  %v169 = vld [vmem:[%s1 + $0x70] sm:$0xff]
  %v170 = vld [vmem:[%s1 + $0x78] sm:$0xff]
  %v171 = vld [vmem:[%s1 + $0x80] sm:$0xff]
  %v172 = vld [vmem:[%s1 + $0x88] sm:$0xff]
  %v173 = vlaneseq
  %v174 = vand.u32 %v173, 127
  %vm175 = vcmp.lt.s32.totalorder %v174, 32
  %v176 = vsel %vm175, 1, 0
  %v177 = vcvt.s32.f32 %v176
  %v178 = vld [vmem:[#allocation2] sm:$0xff]
  %v179 = vld [vmem:[#allocation2 + $0x8] sm:$0xff]
  %vm180 = vcmask 523264
  %v182 = vsel %vm180, 0.0, 0
  %184 = vmatpush.msra.mxu0 0.0
  %185 = vmatpush.msra.mxu0 0.0
  %186 = vmatpush.msra.mxu0 0.0
  %187 = vmatpush.msra.mxu0 0.0
  %188 = vmatpush.msra.mxu0 0.0
  %189 = vmatpush.msra.mxu0 0.0
  %190 = vmatpush.msra.mxu0 0.0
  %191 = vmatpush.msra.mxu0 0.0
  %192 = vmatpush.msra.mxu0 %v171
  %193 = vmatpush.msra.mxu0 %v169
  %194 = vmatpush.msra.mxu0 %v167
  %195 = vmatpush.msra.mxu0 %v165
  %196 = vmatpush.msra.mxu0 %v163
  %197 = vmatpush.msra.mxu0 %v161
  %198 = vmatpush.msra.mxu0 %v159
  %199 = vmatpush.msra.mxu0 %v157
  %200 = vmatmul.f32.gmra.mxu0 %v182
  %v201 = vpop.f32.mrf.mxu0
  %v202 = vadd.f32 0.0, %v201
  %203 = vdwg.mxu0
  %204 = vmatpush.msra.mxu0 0.0
  %205 = vmatpush.msra.mxu0 0.0
  %206 = vmatpush.msra.mxu0 0.0
  %207 = vmatpush.msra.mxu0 0.0
  %208 = vmatpush.msra.mxu0 0.0
  %209 = vmatpush.msra.mxu0 0.0
  %210 = vmatpush.msra.mxu0 0.0
  %211 = vmatpush.msra.mxu0 0.0
  %212 = vmatpush.msra.mxu0 %v172
  %213 = vmatpush.msra.mxu0 %v170
  %214 = vmatpush.msra.mxu0 %v168
  %215 = vmatpush.msra.mxu0 %v166
  %216 = vmatpush.msra.mxu0 %v164
  %217 = vmatpush.msra.mxu0 %v162
  %218 = vmatpush.msra.mxu0 %v160
  %219 = vmatpush.msra.mxu0 %v158
  %220 = vmatmul.f32.gmra.mxu0 %v182
  %v221 = vpop.f32.mrf.mxu0
  %v222 = vadd.f32 0.0, %v221
  %223 = vdwg.mxu0
  %v224 = vadd.f32 %v178, %v202
  %v225 = vadd.f32 %v179, %v222
  %v226 = vxor.u32 %v224, 2147483648
  %v227 = vxor.u32 %v225, 2147483648
  %v228 = vmul.f32 %v226, 1.442695
  %v229 = vpow.pop %v228
  %v230 = vmul.f32 %v227, 1.442695
  %v231 = vpow.pop %v230
  %v232 = vadd.f32 %v229, 1.0
  %v233 = vadd.f32 %v231, 1.0
  %v234 = vrcp.pop %v232
  %v235 = vmul.f32 %v232, %v234
  %v236 = vsub.f32 1.0, %v235
  %v237 = vmul.f32 %v234, %v236
  %v238 = vadd.f32 %v234, %v237
  %vm239 = vweird.f32 %v232
  %vm240 = vweird.f32 %v234
  %vm241 = vmor %vm239, %vm240
  %v242 = vsel %vm241, %v234, %v238
  %v243 = vand.u32 2147483647, %v232
  %vm244 = vcmp.eq.f32.partialorder %v243, 8.507059e+37
  %v245 = vand.u32 %v232, 2147483648
  %v246 = vor.u32 1.1754944e-38, %v245
  %v247 = vsel %vm244, %v246, %v242
  %v248 = vmul.f32 1.0, %v247
  %v249 = vrcp.pop %v233
  %v250 = vmul.f32 %v233, %v249
  %v251 = vsub.f32 1.0, %v250
  %v252 = vmul.f32 %v249, %v251
  %v253 = vadd.f32 %v249, %v252
  %vm254 = vweird.f32 %v233
  %vm255 = vweird.f32 %v249
  %vm256 = vmor %vm254, %vm255
  %v257 = vsel %vm256, %v249, %v253
  %v258 = vand.u32 2147483647, %v233
  %vm259 = vcmp.eq.f32.partialorder %v258, 8.507059e+37
  %v260 = vand.u32 %v233, 2147483648
  %v261 = vor.u32 1.1754944e-38, %v260
  %v262 = vsel %vm259, %v261, %v257
  %v263 = vmul.f32 1.0, %v262
  %v264 = vtanh.pop %v225
  %v265 = vmul.f32 %v248, 0.0
  %267 = vrot.lane.b32.xlu0 %v264, 64
  %v268 = vpop.permute.xlu0 %267
  %v270 = vmul.f32 %v248, %v268
  %272 = vrot.lane.b32.xlu0 %v270, 64
  %v273 = vpop.permute.xlu0 %272
  %v275 = vadd.f32 %v265, %v273
  %v276 = vtanh.pop %v275
  %278 = vrot.lane.b32.xlu0 %v276, 64
  %v279 = vpop.permute.xlu0 %278
  %v281 = vmul.f32 %v263, %v279
  %v282 = vmul.f32 %v281, %v177
  %284 = vrot.lane.b32.xlu0 %v177, 64
  %v285 = vpop.permute.xlu0 %284
  %v287 = vmul.f32 %v275, %v285
  %v288 = vld [vmem:[#allocation2 + $0x10] sm:$0xff]
  %v289 = vld [vmem:[#allocation2 + $0x18] sm:$0xff]
  %v291 = vsel %vm180, %v282, 0
  %293 = vmatpush.msra.mxu0 0.0
  %294 = vmatpush.msra.mxu0 0.0
  %295 = vmatpush.msra.mxu0 0.0
  %296 = vmatpush.msra.mxu0 0.0
  %297 = vmatpush.msra.mxu0 0.0
  %298 = vmatpush.msra.mxu0 0.0
  %299 = vmatpush.msra.mxu0 0.0
  %300 = vmatpush.msra.mxu0 0.0
  %301 = vmatpush.msra.mxu0 %v171
  %302 = vmatpush.msra.mxu0 %v169
  %303 = vmatpush.msra.mxu0 %v167
  %304 = vmatpush.msra.mxu0 %v165
  %305 = vmatpush.msra.mxu0 %v163
  %306 = vmatpush.msra.mxu0 %v161
  %307 = vmatpush.msra.mxu0 %v159
  %308 = vmatpush.msra.mxu0 %v157
  %309 = vmatmul.f32.gmra.mxu0 %v291
  %v310 = vpop.f32.mrf.mxu0
  %v311 = vadd.f32 0.0, %v310
  %312 = vdwg.mxu0
  %313 = vmatpush.msra.mxu0 0.0
  %314 = vmatpush.msra.mxu0 0.0
  %315 = vmatpush.msra.mxu0 0.0
  %316 = vmatpush.msra.mxu0 0.0
  %317 = vmatpush.msra.mxu0 0.0
  %318 = vmatpush.msra.mxu0 0.0
  %319 = vmatpush.msra.mxu0 0.0
  %320 = vmatpush.msra.mxu0 0.0
  %321 = vmatpush.msra.mxu0 %v172
  %322 = vmatpush.msra.mxu0 %v170
  %323 = vmatpush.msra.mxu0 %v168
  %324 = vmatpush.msra.mxu0 %v166
  %325 = vmatpush.msra.mxu0 %v164
  %326 = vmatpush.msra.mxu0 %v162
  %327 = vmatpush.msra.mxu0 %v160
  %328 = vmatpush.msra.mxu0 %v158
  %329 = vmatmul.f32.gmra.mxu0 %v291
  %v330 = vpop.f32.mrf.mxu0
  %v331 = vadd.f32 0.0, %v330
  %332 = vdwg.mxu0
  %v333 = vadd.f32 %v288, %v311
  %v334 = vadd.f32 %v289, %v331
  %v335 = vxor.u32 %v333, 2147483648
  %v336 = vxor.u32 %v334, 2147483648
  %v337 = vmul.f32 %v335, 1.442695
  %v338 = vpow.pop %v337
  %v339 = vmul.f32 %v336, 1.442695
  %v340 = vpow.pop %v339
  %v341 = vadd.f32 %v338, 1.0
  %v342 = vadd.f32 %v340, 1.0
  %v343 = vrcp.pop %v341
  %v344 = vmul.f32 %v341, %v343
  %v345 = vsub.f32 1.0, %v344
  %v346 = vmul.f32 %v343, %v345
  %v347 = vadd.f32 %v343, %v346
  %vm348 = vweird.f32 %v341
  %vm349 = vweird.f32 %v343
  %vm350 = vmor %vm348, %vm349
  %v351 = vsel %vm350, %v343, %v347
  %v352 = vand.u32 2147483647, %v341
  %vm353 = vcmp.eq.f32.partialorder %v352, 8.507059e+37
  %v354 = vand.u32 %v341, 2147483648
  %v355 = vor.u32 1.1754944e-38, %v354
  %v356 = vsel %vm353, %v355, %v351
  %v357 = vmul.f32 1.0, %v356
  %v358 = vrcp.pop %v342
  %v359 = vmul.f32 %v342, %v358
  %v360 = vsub.f32 1.0, %v359
  %v361 = vmul.f32 %v358, %v360
  %v362 = vadd.f32 %v358, %v361
  %vm363 = vweird.f32 %v342
  %vm364 = vweird.f32 %v358
  %vm365 = vmor %vm363, %vm364
  %v366 = vsel %vm365, %v358, %v362
  %v367 = vand.u32 2147483647, %v342
  %vm368 = vcmp.eq.f32.partialorder %v367, 8.507059e+37
  %v369 = vand.u32 %v342, 2147483648
  %v370 = vor.u32 1.1754944e-38, %v369
  %v371 = vsel %vm368, %v370, %v366
  %v372 = vmul.f32 1.0, %v371
  %v373 = vtanh.pop %v334
  %v374 = vmul.f32 %v357, %v287
  %376 = vrot.lane.b32.xlu0 %v373, 64
  %v377 = vpop.permute.xlu0 %376
  %v379 = vmul.f32 %v357, %v377
  %381 = vrot.lane.b32.xlu0 %v379, 64
  %v382 = vpop.permute.xlu0 %381
  %v384 = vadd.f32 %v374, %v382
  %v385 = vtanh.pop %v384
  %387 = vrot.lane.b32.xlu0 %v385, 64
  %v388 = vpop.permute.xlu0 %387
  %v390 = vmul.f32 %v372, %v388
  %392 = vrot.lane.b32.xlu0 %v390, 96
  %v393 = vpop.permute.xlu0 %392
  %vm395 = vcmask 261120
  %396 = vst.msk [vmem:[#allocation3] sm:$0xff] %vm395, %v393
  %vm397 = vcmask 261127
  %398 = vst.msk [vmem:[#allocation4 - $0x7] sm:$0x80] %vm397, %v393
  %v399 = vld [vmem:[#allocation2 + $0x20] sm:$0xff]
  %v400 = vld [vmem:[#allocation2 + $0x28] sm:$0xff]
  %v401 = vsel %vm180, %v390, 0
  %403 = vmatpush.msra.mxu0 0.0
  %404 = vmatpush.msra.mxu0 0.0
  %405 = vmatpush.msra.mxu0 0.0
  %406 = vmatpush.msra.mxu0 0.0
  %407 = vmatpush.msra.mxu0 0.0
  %408 = vmatpush.msra.mxu0 0.0
  %409 = vmatpush.msra.mxu0 0.0
  %410 = vmatpush.msra.mxu0 0.0
  %411 = vmatpush.msra.mxu0 %v171
  %412 = vmatpush.msra.mxu0 %v169
  %413 = vmatpush.msra.mxu0 %v167
  %414 = vmatpush.msra.mxu0 %v165
  %415 = vmatpush.msra.mxu0 %v163
  %416 = vmatpush.msra.mxu0 %v161
  %417 = vmatpush.msra.mxu0 %v159
  %418 = vmatpush.msra.mxu0 %v157
  %419 = vmatmul.f32.gmra.mxu0 %v401
  %v420 = vpop.f32.mrf.mxu0
  %v421 = vadd.f32 0.0, %v420
  %422 = vdwg.mxu0
  %423 = vmatpush.msra.mxu0 0.0
  %424 = vmatpush.msra.mxu0 0.0
  %425 = vmatpush.msra.mxu0 0.0
  %426 = vmatpush.msra.mxu0 0.0
  %427 = vmatpush.msra.mxu0 0.0
  %428 = vmatpush.msra.mxu0 0.0
  %429 = vmatpush.msra.mxu0 0.0
  %430 = vmatpush.msra.mxu0 0.0
  %431 = vmatpush.msra.mxu0 %v172
  %432 = vmatpush.msra.mxu0 %v170
  %433 = vmatpush.msra.mxu0 %v168
  %434 = vmatpush.msra.mxu0 %v166
  %435 = vmatpush.msra.mxu0 %v164
  %436 = vmatpush.msra.mxu0 %v162
  %437 = vmatpush.msra.mxu0 %v160
  %438 = vmatpush.msra.mxu0 %v158
  %439 = vmatmul.f32.gmra.mxu0 %v401
  %v440 = vpop.f32.mrf.mxu0
  %v441 = vadd.f32 0.0, %v440
  %442 = vdwg.mxu0
  %v443 = vadd.f32 %v399, %v421
  %v444 = vadd.f32 %v400, %v441
  %v445 = vxor.u32 %v443, 2147483648
  %v446 = vxor.u32 %v444, 2147483648
  %v447 = vmul.f32 %v445, 1.442695
  %v448 = vpow.pop %v447
  %v449 = vmul.f32 %v446, 1.442695
  %v450 = vpow.pop %v449
  %v451 = vadd.f32 %v448, 1.0
  %v452 = vadd.f32 %v450, 1.0
  %v453 = vrcp.pop %v451
  %v454 = vmul.f32 %v451, %v453
  %v455 = vsub.f32 1.0, %v454
  %v456 = vmul.f32 %v453, %v455
  %v457 = vadd.f32 %v453, %v456
  %vm458 = vweird.f32 %v451
  %vm459 = vweird.f32 %v453
  %vm460 = vmor %vm458, %vm459
  %v461 = vsel %vm460, %v453, %v457
  %v462 = vand.u32 2147483647, %v451
  %vm463 = vcmp.eq.f32.partialorder %v462, 8.507059e+37
  %v464 = vand.u32 %v451, 2147483648
  %v465 = vor.u32 1.1754944e-38, %v464
  %v466 = vsel %vm463, %v465, %v461
  %v467 = vmul.f32 1.0, %v466
  %v468 = vrcp.pop %v452
  %v469 = vmul.f32 %v452, %v468
  %v470 = vsub.f32 1.0, %v469
  %v471 = vmul.f32 %v468, %v470
  %v472 = vadd.f32 %v468, %v471
  %vm473 = vweird.f32 %v452
  %vm474 = vweird.f32 %v468
  %vm475 = vmor %vm473, %vm474
  %v476 = vsel %vm475, %v468, %v472
  %v477 = vand.u32 2147483647, %v452
  %vm478 = vcmp.eq.f32.partialorder %v477, 8.507059e+37
  %v479 = vand.u32 %v452, 2147483648
  %v480 = vor.u32 1.1754944e-38, %v479
  %v481 = vsel %vm478, %v480, %v476
  %v482 = vmul.f32 1.0, %v481
  %v483 = vtanh.pop %v444
  %v484 = vmul.f32 %v467, %v384
  %486 = vrot.lane.b32.xlu0 %v483, 64
  %v487 = vpop.permute.xlu0 %486
  %v489 = vmul.f32 %v467, %v487
  %491 = vrot.lane.b32.xlu0 %v489, 64
  %v492 = vpop.permute.xlu0 %491
  %v494 = vadd.f32 %v484, %v492
  %v495 = vtanh.pop %v494
  %497 = vrot.lane.b32.xlu0 %v495, 64
  %v498 = vpop.permute.xlu0 %497
  %v500 = vmul.f32 %v482, %v498
  %502 = vrot.lane.b32.xlu0 %v500, 96
  %v503 = vpop.permute.xlu0 %502
  %505 = vst.msk [vmem:[#allocation3 + $0x8] sm:$0xff] %vm395, %v503
  %506 = vst.msk [vmem:[#allocation4 - $0x6] sm:$0x80] %vm397, %v503
  %v507 = vld [vmem:[#allocation2 + $0x30] sm:$0xff]
  %v508 = vld [vmem:[#allocation2 + $0x38] sm:$0xff]
  %v509 = vsel %vm180, %v500, 0
  %511 = vmatpush.msra.mxu0 0.0
  %512 = vmatpush.msra.mxu0 0.0
  %513 = vmatpush.msra.mxu0 0.0
  %514 = vmatpush.msra.mxu0 0.0
  %515 = vmatpush.msra.mxu0 0.0
  %516 = vmatpush.msra.mxu0 0.0
  %517 = vmatpush.msra.mxu0 0.0
  %518 = vmatpush.msra.mxu0 0.0
  %519 = vmatpush.msra.mxu0 %v171
  %520 = vmatpush.msra.mxu0 %v169
  %521 = vmatpush.msra.mxu0 %v167
  %522 = vmatpush.msra.mxu0 %v165
  %523 = vmatpush.msra.mxu0 %v163
  %524 = vmatpush.msra.mxu0 %v161
  %525 = vmatpush.msra.mxu0 %v159
  %526 = vmatpush.msra.mxu0 %v157
  %527 = vmatmul.f32.gmra.mxu0 %v509
  %v528 = vpop.f32.mrf.mxu0
  %v529 = vadd.f32 0.0, %v528
  %530 = vdwg.mxu0
  %531 = vmatpush.msra.mxu0 0.0
  %532 = vmatpush.msra.mxu0 0.0
  %533 = vmatpush.msra.mxu0 0.0
  %534 = vmatpush.msra.mxu0 0.0
  %535 = vmatpush.msra.mxu0 0.0
  %536 = vmatpush.msra.mxu0 0.0
  %537 = vmatpush.msra.mxu0 0.0
  %538 = vmatpush.msra.mxu0 0.0
  %539 = vmatpush.msra.mxu0 %v172
  %540 = vmatpush.msra.mxu0 %v170
  %541 = vmatpush.msra.mxu0 %v168
  %542 = vmatpush.msra.mxu0 %v166
  %543 = vmatpush.msra.mxu0 %v164
  %544 = vmatpush.msra.mxu0 %v162
  %545 = vmatpush.msra.mxu0 %v160
  %546 = vmatpush.msra.mxu0 %v158
  %547 = vmatmul.f32.gmra.mxu0 %v509
  %v548 = vpop.f32.mrf.mxu0
  %v549 = vadd.f32 0.0, %v548
  %550 = vdwg.mxu0
  %v551 = vadd.f32 %v507, %v529
  %v552 = vadd.f32 %v508, %v549
  %v553 = vxor.u32 %v551, 2147483648
  %v554 = vxor.u32 %v552, 2147483648
  %v555 = vmul.f32 %v553, 1.442695
  %v556 = vpow.pop %v555
  %v557 = vmul.f32 %v554, 1.442695
  %v558 = vpow.pop %v557
  %v559 = vadd.f32 %v556, 1.0
  %v560 = vadd.f32 %v558, 1.0
  %v561 = vrcp.pop %v559
  %v562 = vmul.f32 %v559, %v561
  %v563 = vsub.f32 1.0, %v562
  %v564 = vmul.f32 %v561, %v563
  %v565 = vadd.f32 %v561, %v564
  %vm566 = vweird.f32 %v559
  %vm567 = vweird.f32 %v561
  %vm568 = vmor %vm566, %vm567
  %v569 = vsel %vm568, %v561, %v565
  %v570 = vand.u32 2147483647, %v559
  %vm571 = vcmp.eq.f32.partialorder %v570, 8.507059e+37
  %v572 = vand.u32 %v559, 2147483648
  %v573 = vor.u32 1.1754944e-38, %v572
  %v574 = vsel %vm571, %v573, %v569
  %v575 = vmul.f32 1.0, %v574
  %v576 = vrcp.pop %v560
  %v577 = vmul.f32 %v560, %v576
  %v578 = vsub.f32 1.0, %v577
  %v579 = vmul.f32 %v576, %v578
  %v580 = vadd.f32 %v576, %v579
  %vm581 = vweird.f32 %v560
  %vm582 = vweird.f32 %v576
  %vm583 = vmor %vm581, %vm582
  %v584 = vsel %vm583, %v576, %v580
  %v585 = vand.u32 2147483647, %v560
  %vm586 = vcmp.eq.f32.partialorder %v585, 8.507059e+37
  %v587 = vand.u32 %v560, 2147483648
  %v588 = vor.u32 1.1754944e-38, %v587
  %v589 = vsel %vm586, %v588, %v584
  %v590 = vmul.f32 1.0, %v589
  %v591 = vtanh.pop %v552
  %v592 = vmul.f32 %v575, %v494
  %594 = vrot.lane.b32.xlu0 %v591, 64
  %v595 = vpop.permute.xlu0 %594
  %v597 = vmul.f32 %v575, %v595
  %599 = vrot.lane.b32.xlu0 %v597, 64
  %v600 = vpop.permute.xlu0 %599
  %v602 = vadd.f32 %v592, %v600
  %v603 = vtanh.pop %v602
  %605 = vrot.lane.b32.xlu0 %v603, 64
  %v606 = vpop.permute.xlu0 %605
  %v608 = vmul.f32 %v590, %v606
  %610 = vrot.lane.b32.xlu0 %v608, 96
  %v611 = vpop.permute.xlu0 %610
  %613 = vst.msk [vmem:[#allocation3 + $0x10] sm:$0xff] %vm395, %v611
  %614 = vst.msk [vmem:[#allocation4 - $0x5] sm:$0x80] %vm397, %v611
  %v615 = vld [vmem:[#allocation2 + $0x40] sm:$0xff]
  %v616 = vld [vmem:[#allocation2 + $0x48] sm:$0xff]
  %v617 = vsel %vm180, %v608, 0
  %619 = vmatpush.msra.mxu0 0.0
  %620 = vmatpush.msra.mxu0 0.0
  %621 = vmatpush.msra.mxu0 0.0
  %622 = vmatpush.msra.mxu0 0.0
  %623 = vmatpush.msra.mxu0 0.0
  %624 = vmatpush.msra.mxu0 0.0
  %625 = vmatpush.msra.mxu0 0.0
  %626 = vmatpush.msra.mxu0 0.0
  %627 = vmatpush.msra.mxu0 %v171
  %628 = vmatpush.msra.mxu0 %v169
  %629 = vmatpush.msra.mxu0 %v167
  %630 = vmatpush.msra.mxu0 %v165
  %631 = vmatpush.msra.mxu0 %v163
  %632 = vmatpush.msra.mxu0 %v161
  %633 = vmatpush.msra.mxu0 %v159
  %634 = vmatpush.msra.mxu0 %v157
  %635 = vmatmul.f32.gmra.mxu0 %v617
  %v636 = vpop.f32.mrf.mxu0
  %v637 = vadd.f32 0.0, %v636
  %638 = vdwg.mxu0
  %639 = vmatpush.msra.mxu0 0.0
  %640 = vmatpush.msra.mxu0 0.0
  %641 = vmatpush.msra.mxu0 0.0
  %642 = vmatpush.msra.mxu0 0.0
  %643 = vmatpush.msra.mxu0 0.0
  %644 = vmatpush.msra.mxu0 0.0
  %645 = vmatpush.msra.mxu0 0.0
  %646 = vmatpush.msra.mxu0 0.0
  %647 = vmatpush.msra.mxu0 %v172
  %648 = vmatpush.msra.mxu0 %v170
  %649 = vmatpush.msra.mxu0 %v168
  %650 = vmatpush.msra.mxu0 %v166
  %651 = vmatpush.msra.mxu0 %v164
  %652 = vmatpush.msra.mxu0 %v162
  %653 = vmatpush.msra.mxu0 %v160
  %654 = vmatpush.msra.mxu0 %v158
  %655 = vmatmul.f32.gmra.mxu0 %v617
  %v656 = vpop.f32.mrf.mxu0
  %v657 = vadd.f32 0.0, %v656
  %658 = vdwg.mxu0
  %v659 = vadd.f32 %v615, %v637
  %v660 = vadd.f32 %v616, %v657
  %v661 = vxor.u32 %v659, 2147483648
  %v662 = vxor.u32 %v660, 2147483648
  %v663 = vmul.f32 %v661, 1.442695
  %v664 = vpow.pop %v663
  %v665 = vmul.f32 %v662, 1.442695
  %v666 = vpow.pop %v665
  %v667 = vadd.f32 %v664, 1.0
  %v668 = vadd.f32 %v666, 1.0
  %v669 = vrcp.pop %v667
  %v670 = vmul.f32 %v667, %v669
  %v671 = vsub.f32 1.0, %v670
  %v672 = vmul.f32 %v669, %v671
  %v673 = vadd.f32 %v669, %v672
  %vm674 = vweird.f32 %v667
  %vm675 = vweird.f32 %v669
  %vm676 = vmor %vm674, %vm675
  %v677 = vsel %vm676, %v669, %v673
  %v678 = vand.u32 2147483647, %v667
  %vm679 = vcmp.eq.f32.partialorder %v678, 8.507059e+37
  %v680 = vand.u32 %v667, 2147483648
  %v681 = vor.u32 1.1754944e-38, %v680
  %v682 = vsel %vm679, %v681, %v677
  %v683 = vmul.f32 1.0, %v682
  %v684 = vrcp.pop %v668
  %v685 = vmul.f32 %v668, %v684
  %v686 = vsub.f32 1.0, %v685
  %v687 = vmul.f32 %v684, %v686
  %v688 = vadd.f32 %v684, %v687
  %vm689 = vweird.f32 %v668
  %vm690 = vweird.f32 %v684
  %vm691 = vmor %vm689, %vm690
  %v692 = vsel %vm691, %v684, %v688
  %v693 = vand.u32 2147483647, %v668
  %vm694 = vcmp.eq.f32.partialorder %v693, 8.507059e+37
  %v695 = vand.u32 %v668, 2147483648
  %v696 = vor.u32 1.1754944e-38, %v695
  %v697 = vsel %vm694, %v696, %v692
  %v698 = vmul.f32 1.0, %v697
  %v699 = vtanh.pop %v660
  %v700 = vmul.f32 %v683, %v602
  %702 = vrot.lane.b32.xlu0 %v699, 64
  %v703 = vpop.permute.xlu0 %702
  %v705 = vmul.f32 %v683, %v703
  %707 = vrot.lane.b32.xlu0 %v705, 64
  %v708 = vpop.permute.xlu0 %707
  %v710 = vadd.f32 %v700, %v708
  %v711 = vtanh.pop %v710
  %713 = vrot.lane.b32.xlu0 %v711, 64
  %v714 = vpop.permute.xlu0 %713
  %v716 = vmul.f32 %v698, %v714
  %718 = vrot.lane.b32.xlu0 %v716, 96
  %v719 = vpop.permute.xlu0 %718
  %721 = vst.msk [vmem:[#allocation3 + $0x18] sm:$0xff] %vm395, %v719
  %722 = vst.msk [vmem:[#allocation4 - $0x4] sm:$0x80] %vm397, %v719
  %v723 = vld [vmem:[#allocation2 + $0x50] sm:$0xff]
  %v724 = vld [vmem:[#allocation2 + $0x58] sm:$0xff]
  %v725 = vsel %vm180, %v716, 0
  %727 = vmatpush.msra.mxu0 0.0
  %728 = vmatpush.msra.mxu0 0.0
  %729 = vmatpush.msra.mxu0 0.0
  %730 = vmatpush.msra.mxu0 0.0
  %731 = vmatpush.msra.mxu0 0.0
  %732 = vmatpush.msra.mxu0 0.0
  %733 = vmatpush.msra.mxu0 0.0
  %734 = vmatpush.msra.mxu0 0.0
  %735 = vmatpush.msra.mxu0 %v171
  %736 = vmatpush.msra.mxu0 %v169
  %737 = vmatpush.msra.mxu0 %v167
  %738 = vmatpush.msra.mxu0 %v165
  %739 = vmatpush.msra.mxu0 %v163
  %740 = vmatpush.msra.mxu0 %v161
  %741 = vmatpush.msra.mxu0 %v159
  %742 = vmatpush.msra.mxu0 %v157
  %743 = vmatmul.f32.gmra.mxu0 %v725
  %v744 = vpop.f32.mrf.mxu0
  %v745 = vadd.f32 0.0, %v744
  %746 = vdwg.mxu0
  %747 = vmatpush.msra.mxu0 0.0
  %748 = vmatpush.msra.mxu0 0.0
  %749 = vmatpush.msra.mxu0 0.0
  %750 = vmatpush.msra.mxu0 0.0
  %751 = vmatpush.msra.mxu0 0.0
  %752 = vmatpush.msra.mxu0 0.0
  %753 = vmatpush.msra.mxu0 0.0
  %754 = vmatpush.msra.mxu0 0.0
  %755 = vmatpush.msra.mxu0 %v172
  %756 = vmatpush.msra.mxu0 %v170
  %757 = vmatpush.msra.mxu0 %v168
  %758 = vmatpush.msra.mxu0 %v166
  %759 = vmatpush.msra.mxu0 %v164
  %760 = vmatpush.msra.mxu0 %v162
  %761 = vmatpush.msra.mxu0 %v160
  %762 = vmatpush.msra.mxu0 %v158
  %763 = vmatmul.f32.gmra.mxu0 %v725
  %v764 = vpop.f32.mrf.mxu0
  %v765 = vadd.f32 0.0, %v764
  %766 = vdwg.mxu0
  %v767 = vadd.f32 %v723, %v745
  %v768 = vadd.f32 %v724, %v765
  %v769 = vxor.u32 %v767, 2147483648
  %v770 = vxor.u32 %v768, 2147483648
  %v771 = vmul.f32 %v769, 1.442695
  %v772 = vpow.pop %v771
  %v773 = vmul.f32 %v770, 1.442695
  %v774 = vpow.pop %v773
  %v775 = vadd.f32 %v772, 1.0
  %v776 = vadd.f32 %v774, 1.0
  %v777 = vrcp.pop %v775
  %v778 = vmul.f32 %v775, %v777
  %v779 = vsub.f32 1.0, %v778
  %v780 = vmul.f32 %v777, %v779
  %v781 = vadd.f32 %v777, %v780
  %vm782 = vweird.f32 %v775
  %vm783 = vweird.f32 %v777
  %vm784 = vmor %vm782, %vm783
  %v785 = vsel %vm784, %v777, %v781
  %v786 = vand.u32 2147483647, %v775
  %vm787 = vcmp.eq.f32.partialorder %v786, 8.507059e+37
  %v788 = vand.u32 %v775, 2147483648
  %v789 = vor.u32 1.1754944e-38, %v788
  %v790 = vsel %vm787, %v789, %v785
  %v791 = vmul.f32 1.0, %v790
  %v792 = vrcp.pop %v776
  %v793 = vmul.f32 %v776, %v792
  %v794 = vsub.f32 1.0, %v793
  %v795 = vmul.f32 %v792, %v794
  %v796 = vadd.f32 %v792, %v795
  %vm797 = vweird.f32 %v776
  %vm798 = vweird.f32 %v792
  %vm799 = vmor %vm797, %vm798
  %v800 = vsel %vm799, %v792, %v796
  %v801 = vand.u32 2147483647, %v776
  %vm802 = vcmp.eq.f32.partialorder %v801, 8.507059e+37
  %v803 = vand.u32 %v776, 2147483648
  %v804 = vor.u32 1.1754944e-38, %v803
  %v805 = vsel %vm802, %v804, %v800
  %v806 = vmul.f32 1.0, %v805
  %v807 = vtanh.pop %v768
  %v808 = vmul.f32 %v791, %v710
  %810 = vrot.lane.b32.xlu0 %v807, 64
  %v811 = vpop.permute.xlu0 %810
  %v813 = vmul.f32 %v791, %v811
  %815 = vrot.lane.b32.xlu0 %v813, 64
  %v816 = vpop.permute.xlu0 %815
  %v818 = vadd.f32 %v808, %v816
  %v819 = vtanh.pop %v818
  %821 = vrot.lane.b32.xlu0 %v819, 64
  %v822 = vpop.permute.xlu0 %821
  %v824 = vmul.f32 %v806, %v822
  %826 = vrot.lane.b32.xlu0 %v824, 96
  %v827 = vpop.permute.xlu0 %826
  %829 = vst.msk [vmem:[#allocation3 + $0x20] sm:$0xff] %vm395, %v827
  %830 = vst.msk [vmem:[#allocation4 - $0x3] sm:$0x80] %vm397, %v827
  %v831 = vld [vmem:[#allocation2 + $0x60] sm:$0xff]
  %v832 = vld [vmem:[#allocation2 + $0x68] sm:$0xff]
  %v833 = vsel %vm180, %v824, 0
  %835 = vmatpush.msra.mxu0 0.0
  %836 = vmatpush.msra.mxu0 0.0
  %837 = vmatpush.msra.mxu0 0.0
  %838 = vmatpush.msra.mxu0 0.0
  %839 = vmatpush.msra.mxu0 0.0
  %840 = vmatpush.msra.mxu0 0.0
  %841 = vmatpush.msra.mxu0 0.0
  %842 = vmatpush.msra.mxu0 0.0
  %843 = vmatpush.msra.mxu0 %v171
  %844 = vmatpush.msra.mxu0 %v169
  %845 = vmatpush.msra.mxu0 %v167
  %846 = vmatpush.msra.mxu0 %v165
  %847 = vmatpush.msra.mxu0 %v163
  %848 = vmatpush.msra.mxu0 %v161
  %849 = vmatpush.msra.mxu0 %v159
  %850 = vmatpush.msra.mxu0 %v157
  %851 = vmatmul.f32.gmra.mxu0 %v833
  %v852 = vpop.f32.mrf.mxu0
  %v853 = vadd.f32 0.0, %v852
  %854 = vdwg.mxu0
  %855 = vmatpush.msra.mxu0 0.0
  %856 = vmatpush.msra.mxu0 0.0
  %857 = vmatpush.msra.mxu0 0.0
  %858 = vmatpush.msra.mxu0 0.0
  %859 = vmatpush.msra.mxu0 0.0
  %860 = vmatpush.msra.mxu0 0.0
  %861 = vmatpush.msra.mxu0 0.0
  %862 = vmatpush.msra.mxu0 0.0
  %863 = vmatpush.msra.mxu0 %v172
  %864 = vmatpush.msra.mxu0 %v170
  %865 = vmatpush.msra.mxu0 %v168
  %866 = vmatpush.msra.mxu0 %v166
  %867 = vmatpush.msra.mxu0 %v164
  %868 = vmatpush.msra.mxu0 %v162
  %869 = vmatpush.msra.mxu0 %v160
  %870 = vmatpush.msra.mxu0 %v158
  %871 = vmatmul.f32.gmra.mxu0 %v833
  %v872 = vpop.f32.mrf.mxu0
  %v873 = vadd.f32 0.0, %v872
  %874 = vdwg.mxu0
  %v875 = vadd.f32 %v831, %v853
  %v876 = vadd.f32 %v832, %v873
  %v877 = vxor.u32 %v875, 2147483648
  %v878 = vxor.u32 %v876, 2147483648
  %v879 = vmul.f32 %v877, 1.442695
  %v880 = vpow.pop %v879
  %v881 = vmul.f32 %v878, 1.442695
  %v882 = vpow.pop %v881
  %v883 = vadd.f32 %v880, 1.0
  %v884 = vadd.f32 %v882, 1.0
  %v885 = vrcp.pop %v883
  %v886 = vmul.f32 %v883, %v885
  %v887 = vsub.f32 1.0, %v886
  %v888 = vmul.f32 %v885, %v887
  %v889 = vadd.f32 %v885, %v888
  %vm890 = vweird.f32 %v883
  %vm891 = vweird.f32 %v885
  %vm892 = vmor %vm890, %vm891
  %v893 = vsel %vm892, %v885, %v889
  %v894 = vand.u32 2147483647, %v883
  %vm895 = vcmp.eq.f32.partialorder %v894, 8.507059e+37
  %v896 = vand.u32 %v883, 2147483648
  %v897 = vor.u32 1.1754944e-38, %v896
  %v898 = vsel %vm895, %v897, %v893
  %v899 = vmul.f32 1.0, %v898
  %v900 = vrcp.pop %v884
  %v901 = vmul.f32 %v884, %v900
  %v902 = vsub.f32 1.0, %v901
  %v903 = vmul.f32 %v900, %v902
  %v904 = vadd.f32 %v900, %v903
  %vm905 = vweird.f32 %v884
  %vm906 = vweird.f32 %v900
  %vm907 = vmor %vm905, %vm906
  %v908 = vsel %vm907, %v900, %v904
  %v909 = vand.u32 2147483647, %v884
  %vm910 = vcmp.eq.f32.partialorder %v909, 8.507059e+37
  %v911 = vand.u32 %v884, 2147483648
  %v912 = vor.u32 1.1754944e-38, %v911
  %v913 = vsel %vm910, %v912, %v908
  %v914 = vmul.f32 1.0, %v913
  %v915 = vtanh.pop %v876
  %v916 = vmul.f32 %v899, %v818
  %918 = vrot.lane.b32.xlu0 %v915, 64
  %v919 = vpop.permute.xlu0 %918
  %v921 = vmul.f32 %v899, %v919
  %923 = vrot.lane.b32.xlu0 %v921, 64
  %v924 = vpop.permute.xlu0 %923
  %v926 = vadd.f32 %v916, %v924
  %v927 = vtanh.pop %v926
  %929 = vrot.lane.b32.xlu0 %v927, 64
  %v930 = vpop.permute.xlu0 %929
  %v932 = vmul.f32 %v914, %v930
  %934 = vrot.lane.b32.xlu0 %v932, 96
  %v935 = vpop.permute.xlu0 %934
  %937 = vst.msk [vmem:[#allocation3 + $0x28] sm:$0xff] %vm395, %v935
  %938 = vst.msk [vmem:[#allocation4 - $0x2] sm:$0x80] %vm397, %v935
  %v939 = vld [vmem:[#allocation2 + $0x70] sm:$0xff]
  %v940 = vld [vmem:[#allocation2 + $0x78] sm:$0xff]
  %v941 = vsel %vm180, %v932, 0
  %943 = vmatpush.msra.mxu0 0.0
  %944 = vmatpush.msra.mxu0 0.0
  %945 = vmatpush.msra.mxu0 0.0
  %946 = vmatpush.msra.mxu0 0.0
  %947 = vmatpush.msra.mxu0 0.0
  %948 = vmatpush.msra.mxu0 0.0
  %949 = vmatpush.msra.mxu0 0.0
  %950 = vmatpush.msra.mxu0 0.0
  %951 = vmatpush.msra.mxu0 %v171
  %952 = vmatpush.msra.mxu0 %v169
  %953 = vmatpush.msra.mxu0 %v167
  %954 = vmatpush.msra.mxu0 %v165
  %955 = vmatpush.msra.mxu0 %v163
  %956 = vmatpush.msra.mxu0 %v161
  %957 = vmatpush.msra.mxu0 %v159
  %958 = vmatpush.msra.mxu0 %v157
  %959 = vmatmul.f32.gmra.mxu0 %v941
  %v960 = vpop.f32.mrf.mxu0
  %v961 = vadd.f32 0.0, %v960
  %962 = vdwg.mxu0
  %963 = vmatpush.msra.mxu0 0.0
  %964 = vmatpush.msra.mxu0 0.0
  %965 = vmatpush.msra.mxu0 0.0
  %966 = vmatpush.msra.mxu0 0.0
  %967 = vmatpush.msra.mxu0 0.0
  %968 = vmatpush.msra.mxu0 0.0
  %969 = vmatpush.msra.mxu0 0.0
  %970 = vmatpush.msra.mxu0 0.0
  %971 = vmatpush.msra.mxu0 %v172
  %972 = vmatpush.msra.mxu0 %v170
  %973 = vmatpush.msra.mxu0 %v168
  %974 = vmatpush.msra.mxu0 %v166
  %975 = vmatpush.msra.mxu0 %v164
  %976 = vmatpush.msra.mxu0 %v162
  %977 = vmatpush.msra.mxu0 %v160
  %978 = vmatpush.msra.mxu0 %v158
  %979 = vmatmul.f32.gmra.mxu0 %v941
  %v980 = vpop.f32.mrf.mxu0
  %v981 = vadd.f32 0.0, %v980
  %982 = vdwg.mxu0
  %v983 = vadd.f32 %v939, %v961
  %v984 = vadd.f32 %v940, %v981
  %v985 = vxor.u32 %v983, 2147483648
  %v986 = vxor.u32 %v984, 2147483648
  %v987 = vmul.f32 %v985, 1.442695
  %v988 = vpow.pop %v987
  %v989 = vmul.f32 %v986, 1.442695
  %v990 = vpow.pop %v989
  %v991 = vadd.f32 %v988, 1.0
  %v992 = vadd.f32 %v990, 1.0
  %v993 = vrcp.pop %v991
  %v994 = vmul.f32 %v991, %v993
  %v995 = vsub.f32 1.0, %v994
  %v996 = vmul.f32 %v993, %v995
  %v997 = vadd.f32 %v993, %v996
  %vm998 = vweird.f32 %v991
  %vm999 = vweird.f32 %v993
  %vm1000 = vmor %vm998, %vm999
  %v1001 = vsel %vm1000, %v993, %v997
  %v1002 = vand.u32 2147483647, %v991
  %vm1003 = vcmp.eq.f32.partialorder %v1002, 8.507059e+37
  %v1004 = vand.u32 %v991, 2147483648
  %v1005 = vor.u32 1.1754944e-38, %v1004
  %v1006 = vsel %vm1003, %v1005, %v1001
  %v1007 = vmul.f32 1.0, %v1006
  %v1008 = vrcp.pop %v992
  %v1009 = vmul.f32 %v992, %v1008
  %v1010 = vsub.f32 1.0, %v1009
  %v1011 = vmul.f32 %v1008, %v1010
  %v1012 = vadd.f32 %v1008, %v1011
  %vm1013 = vweird.f32 %v992
  %vm1014 = vweird.f32 %v1008
  %vm1015 = vmor %vm1013, %vm1014
  %v1016 = vsel %vm1015, %v1008, %v1012
  %v1017 = vand.u32 2147483647, %v992
  %vm1018 = vcmp.eq.f32.partialorder %v1017, 8.507059e+37
  %v1019 = vand.u32 %v992, 2147483648
  %v1020 = vor.u32 1.1754944e-38, %v1019
  %v1021 = vsel %vm1018, %v1020, %v1016
  %v1022 = vmul.f32 1.0, %v1021
  %v1023 = vtanh.pop %v984
  %v1024 = vmul.f32 %v1007, %v926
  %1026 = vrot.lane.b32.xlu0 %v1023, 64
  %v1027 = vpop.permute.xlu0 %1026
  %v1029 = vmul.f32 %v1007, %v1027
  %1031 = vrot.lane.b32.xlu0 %v1029, 64
  %v1032 = vpop.permute.xlu0 %1031
  %v1034 = vadd.f32 %v1024, %v1032
  %v1035 = vtanh.pop %v1034
  %1037 = vrot.lane.b32.xlu0 %v1035, 64
  %v1038 = vpop.permute.xlu0 %1037
  %v1040 = vmul.f32 %v1022, %v1038
  %1042 = vrot.lane.b32.xlu0 %v1040, 96
  %v1043 = vpop.permute.xlu0 %1042
  %1045 = vst.msk [vmem:[#allocation3 + $0x30] sm:$0xff] %vm395, %v1043
  %1046 = vst.msk [vmem:[#allocation4 - $0x1] sm:$0x80] %vm397, %v1043
  %v1047 = vld [vmem:[#allocation2 + $0x70] sm:$0xff]
  %v1048 = vld [vmem:[#allocation2 + $0x78] sm:$0xff]
  %v1049 = vsel %vm180, %v1040, 0
  %1051 = vmatpush.msra.mxu0 0.0
  %1052 = vmatpush.msra.mxu0 0.0
  %1053 = vmatpush.msra.mxu0 0.0
  %1054 = vmatpush.msra.mxu0 0.0
  %1055 = vmatpush.msra.mxu0 0.0
  %1056 = vmatpush.msra.mxu0 0.0
  %1057 = vmatpush.msra.mxu0 0.0
  %1058 = vmatpush.msra.mxu0 0.0
  %1059 = vmatpush.msra.mxu0 %v171
  %1060 = vmatpush.msra.mxu0 %v169
  %1061 = vmatpush.msra.mxu0 %v167
  %1062 = vmatpush.msra.mxu0 %v165
  %1063 = vmatpush.msra.mxu0 %v163
  %1064 = vmatpush.msra.mxu0 %v161
  %1065 = vmatpush.msra.mxu0 %v159
  %1066 = vmatpush.msra.mxu0 %v157
  %1067 = vmatmul.f32.gmra.mxu0 %v1049
  %v1068 = vpop.f32.mrf.mxu0
  %v1069 = vadd.f32 0.0, %v1068
  %1070 = vdwg.mxu0
  %1071 = vmatpush.msra.mxu0 0.0
  %1072 = vmatpush.msra.mxu0 0.0
  %1073 = vmatpush.msra.mxu0 0.0
  %1074 = vmatpush.msra.mxu0 0.0
  %1075 = vmatpush.msra.mxu0 0.0
  %1076 = vmatpush.msra.mxu0 0.0
  %1077 = vmatpush.msra.mxu0 0.0
  %1078 = vmatpush.msra.mxu0 0.0
  %1079 = vmatpush.msra.mxu0 %v172
  %1080 = vmatpush.msra.mxu0 %v170
  %1081 = vmatpush.msra.mxu0 %v168
  %1082 = vmatpush.msra.mxu0 %v166
  %1083 = vmatpush.msra.mxu0 %v164
  %1084 = vmatpush.msra.mxu0 %v162
  %1085 = vmatpush.msra.mxu0 %v160
  %1086 = vmatpush.msra.mxu0 %v158
  %1087 = vmatmul.f32.gmra.mxu0 %v1049
  %v1088 = vpop.f32.mrf.mxu0
  %v1089 = vadd.f32 0.0, %v1088
  %1090 = vdwg.mxu0
  %v1091 = vadd.f32 %v1047, %v1069
  %v1092 = vadd.f32 %v1048, %v1089
  %v1093 = vxor.u32 %v1091, 2147483648
  %v1094 = vxor.u32 %v1092, 2147483648
  %v1095 = vmul.f32 %v1093, 1.442695
  %v1096 = vpow.pop %v1095
  %v1097 = vmul.f32 %v1094, 1.442695
  %v1098 = vpow.pop %v1097
  %v1099 = vadd.f32 %v1096, 1.0
  %v1100 = vadd.f32 %v1098, 1.0
  %v1101 = vrcp.pop %v1099
  %v1102 = vmul.f32 %v1099, %v1101
  %v1103 = vsub.f32 1.0, %v1102
  %v1104 = vmul.f32 %v1101, %v1103
  %v1105 = vadd.f32 %v1101, %v1104
  %vm1106 = vweird.f32 %v1099
  %vm1107 = vweird.f32 %v1101
  %vm1108 = vmor %vm1106, %vm1107
  %v1109 = vsel %vm1108, %v1101, %v1105
  %v1110 = vand.u32 2147483647, %v1099
  %vm1111 = vcmp.eq.f32.partialorder %v1110, 8.507059e+37
  %v1112 = vand.u32 %v1099, 2147483648
  %v1113 = vor.u32 1.1754944e-38, %v1112
  %v1114 = vsel %vm1111, %v1113, %v1109
  %v1115 = vmul.f32 1.0, %v1114
  %v1116 = vrcp.pop %v1100
  %v1117 = vmul.f32 %v1100, %v1116
  %v1118 = vsub.f32 1.0, %v1117
  %v1119 = vmul.f32 %v1116, %v1118
  %v1120 = vadd.f32 %v1116, %v1119
  %vm1121 = vweird.f32 %v1100
  %vm1122 = vweird.f32 %v1116
  %vm1123 = vmor %vm1121, %vm1122
  %v1124 = vsel %vm1123, %v1116, %v1120
  %v1125 = vand.u32 2147483647, %v1100
  %vm1126 = vcmp.eq.f32.partialorder %v1125, 8.507059e+37
  %v1127 = vand.u32 %v1100, 2147483648
  %v1128 = vor.u32 1.1754944e-38, %v1127
  %v1129 = vsel %vm1126, %v1128, %v1124
  %v1130 = vmul.f32 1.0, %v1129
  %v1131 = vtanh.pop %v1092
  %v1132 = vmul.f32 %v1115, %v1034
  %1134 = vrot.lane.b32.xlu0 %v1131, 64
  %v1135 = vpop.permute.xlu0 %1134
  %v1137 = vmul.f32 %v1115, %v1135
  %1139 = vrot.lane.b32.xlu0 %v1137, 64
  %v1140 = vpop.permute.xlu0 %1139
  %v1142 = vadd.f32 %v1132, %v1140
  %v1143 = vtanh.pop %v1142
  %1145 = vrot.lane.b32.xlu0 %v1143, 64
  %v1146 = vpop.permute.xlu0 %1145
  %v1148 = vmul.f32 %v1130, %v1146
  %1150 = vrot.lane.b32.xlu0 %v1148, 96
  %v1151 = vpop.permute.xlu0 %1150
  %1153 = vst.msk [vmem:[#allocation3 + $0x38] sm:$0xff] %vm395, %v1151
  %1154 = vst.msk [vmem:[#allocation4] sm:$0x80] %vm397, %v1151
  %v1155 = vld [vmem:[%s2] sm:$0xff]
  %v1156 = vld [vmem:[%s2 + $0x8] sm:$0xff]
  %v1157 = vld [vmem:[%s2 + $0x10] sm:$0xff]
  %v1158 = vld [vmem:[%s2 + $0x18] sm:$0xff]
  %v1159 = vld [vmem:[%s2 + $0x20] sm:$0x1]
  %v1160 = vld [vmem:[%s2 + $0x28] sm:$0xff]
  %v1161 = vld [vmem:[%s2 + $0x30] sm:$0xff]
  %v1162 = vld [vmem:[%s2 + $0x38] sm:$0xff]
  %v1163 = vld [vmem:[%s2 + $0x40] sm:$0xff]
  %v1164 = vld [vmem:[#allocation3] sm:$0xff]
  %v1165 = vld [vmem:[#allocation3 + $0x8] sm:$0xff]
  %v1166 = vld [vmem:[#allocation3 + $0x10] sm:$0xff]
  %v1167 = vld [vmem:[#allocation3 + $0x18] sm:$0xff]
  %v1168 = vld [vmem:[#allocation3 + $0x20] sm:$0xff]
  %v1169 = vld [vmem:[#allocation3 + $0x28] sm:$0xff]
  %v1170 = vld [vmem:[#allocation3 + $0x30] sm:$0xff]
  %v1171 = vld [vmem:[#allocation3 + $0x38] sm:$0xff]
  %v1172 = vperm.slane %v1159, 0
  %v1174 = vsel %vm395, %v1164, 0
  %v1177 = vsel %vm395, %v1165, 0
  %v1180 = vsel %vm395, %v1166, 0
  %v1183 = vsel %vm395, %v1167, 0
  %v1186 = vsel %vm395, %v1168, 0
  %v1189 = vsel %vm395, %v1169, 0
  %v1192 = vsel %vm395, %v1170, 0
  %v1195 = vsel %vm395, %v1171, 0
  %1197 = vmatpush.msra.mxu0 0.0
  %1198 = vmatpush.msra.mxu0 0.0
  %1199 = vmatpush.msra.mxu0 0.0
  %1200 = vmatpush.msra.mxu0 0.0
  %1201 = vmatpush.msra.mxu0 0.0
  %1202 = vmatpush.msra.mxu0 0.0
  %1203 = vmatpush.msra.mxu0 0.0
  %1204 = vmatpush.msra.mxu0 0.0
  %1205 = vmatpush.msra.mxu0 0.0
  %1206 = vmatpush.msra.mxu0 0.0
  %1207 = vmatpush.msra.mxu0 0.0
  %1208 = vmatpush.msra.mxu0 0.0
  %1209 = vmatpush.msra.mxu0 %v1158
  %1210 = vmatpush.msra.mxu0 %v1157
  %1211 = vmatpush.msra.mxu0 %v1156
  %1212 = vmatpush.msra.mxu0 %v1155
  %1213 = vmatmul.f32.gmra.mxu0 %v1174
  %v1214 = vpop.f32.mrf.mxu0
  %v1215 = vadd.f32 %v1172, %v1214
  %1216 = vmatmul.f32.gmra.mxu0 %v1177
  %v1217 = vpop.f32.mrf.mxu0
  %v1218 = vadd.f32 %v1172, %v1217
  %1219 = vmatmul.f32.gmra.mxu0 %v1180
  %v1220 = vpop.f32.mrf.mxu0
  %v1221 = vadd.f32 %v1172, %v1220
  %1222 = vmatmul.f32.gmra.mxu0 %v1183
  %v1223 = vpop.f32.mrf.mxu0
  %v1224 = vadd.f32 %v1172, %v1223
  %1225 = vmatmul.f32.gmra.mxu0 %v1186
  %v1226 = vpop.f32.mrf.mxu0
  %v1227 = vadd.f32 %v1172, %v1226
  %1228 = vmatmul.f32.gmra.mxu0 %v1189
  %v1229 = vpop.f32.mrf.mxu0
  %v1230 = vadd.f32 %v1172, %v1229
  %1231 = vmatmul.f32.gmra.mxu0 %v1192
  %v1232 = vpop.f32.mrf.mxu0
  %v1233 = vadd.f32 %v1172, %v1232
  %1234 = vmatmul.f32.gmra.mxu0 %v1195
  %v1235 = vpop.f32.mrf.mxu0
  %v1236 = vadd.f32 %v1172, %v1235
  %1237 = vdwg.mxu0
  %1242 = vrot.lane.b32.xlu0 %v1155, 64
  %v1243 = vpop.permute.xlu0 %1242
  %1244 = vrot.lane.b32.xlu0 %v1156, 64
  %v1245 = vpop.permute.xlu0 %1244
  %1246 = vrot.lane.b32.xlu0 %v1157, 64
  %v1247 = vpop.permute.xlu0 %1246
  %1248 = vrot.lane.b32.xlu0 %v1158, 64
  %v1249 = vpop.permute.xlu0 %1248
  %1255 = vrot.lane.b32.xlu0 %v1172, 64
  %v1256 = vpop.permute.xlu0 %1255
  %v1258 = vsel %vm395, %v1151, 0
  %1260 = vmatpush.msra.mxu0 0.0
  %1261 = vmatpush.msra.mxu0 0.0
  %1262 = vmatpush.msra.mxu0 0.0
  %1263 = vmatpush.msra.mxu0 0.0
  %1264 = vmatpush.msra.mxu0 0.0
  %1265 = vmatpush.msra.mxu0 0.0
  %1266 = vmatpush.msra.mxu0 0.0
  %1267 = vmatpush.msra.mxu0 0.0
  %1268 = vmatpush.msra.mxu0 0.0
  %1269 = vmatpush.msra.mxu0 0.0
  %1270 = vmatpush.msra.mxu0 0.0
  %1271 = vmatpush.msra.mxu0 0.0
  %1272 = vmatpush.msra.mxu0 %v1249
  %1273 = vmatpush.msra.mxu0 %v1247
  %1274 = vmatpush.msra.mxu0 %v1245
  %1275 = vmatpush.msra.mxu0 %v1243
  %1276 = vmatmul.f32.gmra.mxu0 %v1258
  %v1277 = vpop.f32.mrf.mxu0
  %v1278 = vadd.f32 %v1256, %v1277
  %1279 = vdwg.mxu0
  %v1280 = vmul.f32 %v1278, 0.35355338
  %v1281 = vmul.f32 %v1280, %v1215
  %v1282 = vmul.f32 %v1280, %v1218
  %v1283 = vmul.f32 %v1280, %v1221
  %v1284 = vmul.f32 %v1280, %v1224
  %v1285 = vmul.f32 %v1280, %v1227
  %v1286 = vmul.f32 %v1280, %v1230
  %v1287 = vmul.f32 %v1280, %v1233
  %v1288 = vmul.f32 %v1280, %v1236
  %v1290 = vsel %vm395, %v1281, 0
  %v1293 = vsel %vm395, %v1282, 0
  %v1296 = vsel %vm395, %v1283, 0
  %v1299 = vsel %vm395, %v1284, 0
  %v1302 = vsel %vm395, %v1285, 0
  %v1305 = vsel %vm395, %v1286, 0
  %v1308 = vsel %vm395, %v1287, 0
  %v1311 = vsel %vm395, %v1288, 0
  %1313 = vmatpush.msra.mxu0 0.0
  %1314 = vmatpush.msra.mxu0 0.0
  %1315 = vmatpush.msra.mxu0 0.0
  %1316 = vmatpush.msra.mxu0 0.0
  %1317 = vmatpush.msra.mxu0 0.0
  %1318 = vmatpush.msra.mxu0 0.0
  %1319 = vmatpush.msra.mxu0 0.0
  %1320 = vmatpush.msra.mxu0 0.0
  %1321 = vmatpush.msra.mxu0 0.0
  %1322 = vmatpush.msra.mxu0 0.0
  %1323 = vmatpush.msra.mxu0 0.0
  %1324 = vmatpush.msra.mxu0 0.0
  %1325 = vmatpush.msra.mxu0 %v1163
  %1326 = vmatpush.msra.mxu0 %v1162
  %1327 = vmatpush.msra.mxu0 %v1161
  %1328 = vmatpush.msra.mxu0 %v1160
  %1329 = vmatmul.f32.gmra.mxu0 %v1290
  %v1330 = vpop.f32.mrf.mxu0
  %v1331 = vadd.f32 0.0, %v1330
  %1332 = vmatmul.f32.gmra.mxu0 %v1293
  %v1333 = vpop.f32.mrf.mxu0
  %v1334 = vadd.f32 0.0, %v1333
  %1335 = vmatmul.f32.gmra.mxu0 %v1296
  %v1336 = vpop.f32.mrf.mxu0
  %v1337 = vadd.f32 0.0, %v1336
  %1338 = vmatmul.f32.gmra.mxu0 %v1299
  %v1339 = vpop.f32.mrf.mxu0
  %v1340 = vadd.f32 0.0, %v1339
  %1341 = vmatmul.f32.gmra.mxu0 %v1302
  %v1342 = vpop.f32.mrf.mxu0
  %v1343 = vadd.f32 0.0, %v1342
  %1344 = vmatmul.f32.gmra.mxu0 %v1305
  %v1345 = vpop.f32.mrf.mxu0
  %v1346 = vadd.f32 0.0, %v1345
  %1347 = vmatmul.f32.gmra.mxu0 %v1308
  %v1348 = vpop.f32.mrf.mxu0
  %v1349 = vadd.f32 0.0, %v1348
  %1350 = vmatmul.f32.gmra.mxu0 %v1311
  %v1351 = vpop.f32.mrf.mxu0
  %v1352 = vadd.f32 0.0, %v1351
  %1353 = vdwg.mxu0
  %v1354 = vsel %vm395, %v1331, -inf
  %v1355 = vsel %vm395, %v1334, -inf
  %v1356 = vsel %vm395, %v1337, -inf
  %v1357 = vsel %vm395, %v1340, -inf
  %v1358 = vsel %vm395, %v1343, -inf
  %v1359 = vmax.f32 %v1354, %v1358
  %v1360 = vsel %vm395, %v1346, -inf
  %v1361 = vmax.f32 %v1355, %v1360
  %v1362 = vsel %vm395, %v1349, -inf
  %v1363 = vmax.f32 %v1356, %v1362
  %v1364 = vsel %vm395, %v1352, -inf
  %v1365 = vmax.f32 %v1357, %v1364
  %v1366 = vmax.f32 %v1359, %v1361
  %v1367 = vmax.f32 %v1363, %v1365
  %v1368 = vmax.f32 %v1366, %v1367
  %v1369 = vsub.f32 %v1331, %v1368
  %v1370 = vsub.f32 %v1334, %v1368
  %v1371 = vsub.f32 %v1337, %v1368
  %v1372 = vsub.f32 %v1340, %v1368
  %v1373 = vsub.f32 %v1343, %v1368
  %v1374 = vsub.f32 %v1346, %v1368
  %v1375 = vsub.f32 %v1349, %v1368
  %v1376 = vsub.f32 %v1352, %v1368
  %v1377 = vmul.f32 %v1369, 1.442695
  %v1378 = vpow.pop %v1377
  %v1379 = vmul.f32 %v1370, 1.442695
  %v1380 = vpow.pop %v1379
  %v1381 = vmul.f32 %v1371, 1.442695
  %v1382 = vpow.pop %v1381
  %v1383 = vmul.f32 %v1372, 1.442695
  %v1384 = vpow.pop %v1383
  %v1385 = vmul.f32 %v1373, 1.442695
  %v1386 = vpow.pop %v1385
  %v1387 = vmul.f32 %v1374, 1.442695
  %v1388 = vpow.pop %v1387
  %v1389 = vmul.f32 %v1375, 1.442695
  %v1390 = vpow.pop %v1389
  %v1391 = vmul.f32 %v1376, 1.442695
  %v1392 = vpow.pop %v1391
  %v1393 = vsel %vm395, %v1378, 0.0
  %v1394 = vsel %vm395, %v1380, 0.0
  %v1395 = vadd.f32 %v1393, %v1394
  %v1396 = vsel %vm395, %v1382, 0.0
  %v1397 = vadd.f32 %v1395, %v1396
  %v1398 = vsel %vm395, %v1384, 0.0
  %v1399 = vadd.f32 %v1397, %v1398
  %v1400 = vsel %vm395, %v1386, 0.0
  %v1401 = vadd.f32 %v1399, %v1400
  %v1402 = vsel %vm395, %v1388, 0.0
  %v1403 = vadd.f32 %v1401, %v1402
  %v1404 = vsel %vm395, %v1390, 0.0
  %v1405 = vadd.f32 %v1403, %v1404
  %v1406 = vsel %vm395, %v1392, 0.0
  %v1407 = vadd.f32 %v1405, %v1406
  %v1408 = vrcp.pop %v1407
  %v1409 = vmul.f32 %v1407, %v1408
  %v1410 = vsub.f32 1.0, %v1409
  %v1411 = vmul.f32 %v1408, %v1410
  %v1412 = vadd.f32 %v1408, %v1411
  %vm1413 = vweird.f32 %v1407
  %vm1414 = vweird.f32 %v1408
  %vm1415 = vmor %vm1413, %vm1414
  %v1416 = vsel %vm1415, %v1408, %v1412
  %v1417 = vand.u32 2147483647, %v1407
  %vm1418 = vcmp.eq.f32.partialorder %v1417, 8.507059e+37
  %v1419 = vand.u32 %v1407, 2147483648
  %v1420 = vor.u32 1.1754944e-38, %v1419
  %v1421 = vsel %vm1418, %v1420, %v1416
  %v1422 = vmul.f32 %v1378, %v1421
  %v1423 = vmul.f32 %v1380, %v1421
  %v1424 = vmul.f32 %v1382, %v1421
  %v1425 = vmul.f32 %v1384, %v1421
  %v1426 = vmul.f32 %v1386, %v1421
  %v1427 = vmul.f32 %v1388, %v1421
  %v1428 = vmul.f32 %v1390, %v1421
  %v1429 = vmul.f32 %v1392, %v1421
  %1438 = vrot.lane.b32.xlu0 %v1215, 96
  %v1439 = vpop.permute.xlu0 %1438
  %1440 = vrot.lane.b32.xlu0 %v1218, 96
  %v1441 = vpop.permute.xlu0 %1440
  %1442 = vrot.lane.b32.xlu0 %v1221, 96
  %v1443 = vpop.permute.xlu0 %1442
  %1444 = vrot.lane.b32.xlu0 %v1224, 96
  %v1445 = vpop.permute.xlu0 %1444
  %1446 = vrot.lane.b32.xlu0 %v1227, 96
  %v1447 = vpop.permute.xlu0 %1446
  %1448 = vrot.lane.b32.xlu0 %v1230, 96
  %v1449 = vpop.permute.xlu0 %1448
  %1450 = vrot.lane.b32.xlu0 %v1233, 96
  %v1451 = vpop.permute.xlu0 %1450
  %1452 = vrot.lane.b32.xlu0 %v1236, 96
  %v1453 = vpop.permute.xlu0 %1452
  %v1462 = vmul.f32 %v1422, %v1439
  %v1463 = vmul.f32 %v1423, %v1441
  %v1464 = vmul.f32 %v1424, %v1443
  %v1465 = vmul.f32 %v1425, %v1445
  %v1466 = vmul.f32 %v1426, %v1447
  %v1467 = vmul.f32 %v1427, %v1449
  %v1468 = vmul.f32 %v1428, %v1451
  %v1469 = vmul.f32 %v1429, %v1453
  %v1470 = vsel %vm395, %v1462, 0.0
  %v1471 = vsel %vm395, %v1463, 0.0
  %v1472 = vadd.f32 %v1470, %v1471
  %v1473 = vsel %vm395, %v1464, 0.0
  %v1474 = vadd.f32 %v1472, %v1473
  %v1475 = vsel %vm395, %v1465, 0.0
  %v1476 = vadd.f32 %v1474, %v1475
  %v1477 = vsel %vm395, %v1466, 0.0
  %v1478 = vadd.f32 %v1476, %v1477
  %v1479 = vsel %vm395, %v1467, 0.0
  %v1480 = vadd.f32 %v1478, %v1479
  %v1481 = vsel %vm395, %v1468, 0.0
  %v1482 = vadd.f32 %v1480, %v1481
  %v1483 = vsel %vm395, %v1469, 0.0
  %v1484 = vadd.f32 %v1482, %v1483
  %1485 = vrot.lane.b32.xlu0 %v1155, 32
  %v1486 = vpop.permute.xlu0 %1485
  %1487 = vrot.lane.b32.xlu0 %v1156, 32
  %v1488 = vpop.permute.xlu0 %1487
  %1489 = vrot.lane.b32.xlu0 %v1157, 32
  %v1490 = vpop.permute.xlu0 %1489
  %1491 = vrot.lane.b32.xlu0 %v1158, 32
  %v1492 = vpop.permute.xlu0 %1491
  %1497 = vrot.lane.b32.xlu0 %v1172, 32
  %v1498 = vpop.permute.xlu0 %1497
  %v1501 = vsel %vm395, %v1484, 0
  %1503 = vmatpush.msra.mxu0 0.0
  %1504 = vmatpush.msra.mxu0 0.0
  %1505 = vmatpush.msra.mxu0 0.0
  %1506 = vmatpush.msra.mxu0 0.0
  %1507 = vmatpush.msra.mxu0 0.0
  %1508 = vmatpush.msra.mxu0 0.0
  %1509 = vmatpush.msra.mxu0 0.0
  %1510 = vmatpush.msra.mxu0 0.0
  %1511 = vmatpush.msra.mxu0 0.0
  %1512 = vmatpush.msra.mxu0 0.0
  %1513 = vmatpush.msra.mxu0 0.0
  %1514 = vmatpush.msra.mxu0 0.0
  %1515 = vmatpush.msra.mxu0 %v1492
  %1516 = vmatpush.msra.mxu0 %v1490
  %1517 = vmatpush.msra.mxu0 %v1488
  %1518 = vmatpush.msra.mxu0 %v1486
  %1519 = vmatmul.f32.gmra.mxu0 %v1501
  %v1520 = vpop.f32.mrf.mxu0
  %v1521 = vadd.f32 %v1498, %v1520
  %1522 = vdwg.mxu0
  %v1523 = vld [vmem:[#allocation4] sm:$0xff]
  %v1524 = vadd.f32 %v1523, %v1521
  %v1525 = vsel %vm395, %v1524, 0.0
  %1526 = vadd.xlane.f32.xlu0 %v1525
  %v1527 = vpop.xlane.xlu0 %1526
  %v1528 = vrcp.pop 32.0
  %v1529 = vmul.f32 32.0, %v1528
  %v1530 = vsub.f32 1.0, %v1529
  %v1531 = vmul.f32 %v1528, %v1530
  %v1532 = vadd.f32 %v1528, %v1531
  %vm1533 = vweird.f32 %v1528
  %v1534 = vsel %vm1533, %v1528, %v1532
  %v1535 = vmul.f32 %v1527, %v1534
  %v1536 = vsub.f32 %v1524, %v1535
  %v1537 = vmul.f32 %v1536, %v1536
  %v1538 = vsel %vm395, %v1537, 0.0
  %1539 = vadd.xlane.f32.xlu0 %v1538
  %v1540 = vpop.xlane.xlu0 %1539
  %v1541 = vmul.f32 %v1540, %v1534
  %v1542 = vadd.f32 %v1541, 1e-05
  %v1543 = vrsqrt.pop %v1542
  %v1544 = vmul.f32 %v1543, %v1542
  %v1545 = vmul.f32 %v1544, %v1543
  %v1546 = vmul.f32 0.5, %v1545
  %v1547 = vsub.f32 1.5, %v1546
  %v1548 = vmul.f32 %v1543, %v1547
  %vm1549 = vweird.f32 %v1542
  %vm1550 = vweird.f32 %v1543
  %vm1551 = vmor %vm1549, %vm1550
  %v1552 = vsel %vm1551, %v1543, %v1548
  %v1553 = vmul.f32 %v1536, %v1552
  %v1554 = vld [vmem:[%s3] sm:$0x1]
  %v1555 = vperm.slane %v1554, 0
  %v1556 = vmul.f32 %v1553, %v1555
  %v1557 = vld [vmem:[%s3 + $0x1] sm:$0x1]
  %v1558 = vperm.slane %v1557, 0
  %v1559 = vadd.f32 %v1556, %v1558
  %v1560 = vld [vmem:[%s3 + $0x8] sm:$0xff]
  %v1561 = vld [vmem:[%s3 + $0x10] sm:$0xff]
  %v1562 = vld [vmem:[%s3 + $0x18] sm:$0xff]
  %v1563 = vld [vmem:[%s3 + $0x20] sm:$0xff]
  %v1564 = vld [vmem:[%s3 + $0x2] sm:$0x1]
  %v1565 = vperm.slane %v1564, 0
  %v1567 = vsel %vm395, %v1559, 0
  %1569 = vmatpush.msra.mxu0 0.0
  %1570 = vmatpush.msra.mxu0 0.0
  %1571 = vmatpush.msra.mxu0 0.0
  %1572 = vmatpush.msra.mxu0 0.0
  %1573 = vmatpush.msra.mxu0 0.0
  %1574 = vmatpush.msra.mxu0 0.0
  %1575 = vmatpush.msra.mxu0 0.0
  %1576 = vmatpush.msra.mxu0 0.0
  %1577 = vmatpush.msra.mxu0 0.0
  %1578 = vmatpush.msra.mxu0 0.0
  %1579 = vmatpush.msra.mxu0 0.0
  %1580 = vmatpush.msra.mxu0 0.0
  %1581 = vmatpush.msra.mxu0 %v1563
  %1582 = vmatpush.msra.mxu0 %v1562
  %1583 = vmatpush.msra.mxu0 %v1561
  %1584 = vmatpush.msra.mxu0 %v1560
  %1585 = vmatmul.f32.gmra.mxu0 %v1567
  %v1586 = vpop.f32.mrf.mxu0
  %v1587 = vadd.f32 %v1565, %v1586
  %1588 = vdwg.mxu0
  %v1589 = vmax.f32 %v1587, 0.0
  %v1590 = vld [vmem:[%s3 + $0x28] sm:$0xff]
  %v1591 = vld [vmem:[%s3 + $0x30] sm:$0xff]
  %v1592 = vld [vmem:[%s3 + $0x38] sm:$0xff]
  %v1593 = vld [vmem:[%s3 + $0x40] sm:$0xff]
  %v1594 = vld [vmem:[%s3 + $0x3] sm:$0x1]
  %v1595 = vperm.slane %v1594, 0
  %v1597 = vsel %vm395, %v1589, 0
  %1599 = vmatpush.msra.mxu0 0.0
  %1600 = vmatpush.msra.mxu0 0.0
  %1601 = vmatpush.msra.mxu0 0.0
  %1602 = vmatpush.msra.mxu0 0.0
  %1603 = vmatpush.msra.mxu0 0.0
  %1604 = vmatpush.msra.mxu0 0.0
  %1605 = vmatpush.msra.mxu0 0.0
  %1606 = vmatpush.msra.mxu0 0.0
  %1607 = vmatpush.msra.mxu0 0.0
  %1608 = vmatpush.msra.mxu0 0.0
  %1609 = vmatpush.msra.mxu0 0.0
  %1610 = vmatpush.msra.mxu0 0.0
  %1611 = vmatpush.msra.mxu0 %v1593
  %1612 = vmatpush.msra.mxu0 %v1592
  %1613 = vmatpush.msra.mxu0 %v1591
  %1614 = vmatpush.msra.mxu0 %v1590
  %1615 = vmatmul.f32.gmra.mxu0 %v1597
  %v1616 = vpop.f32.mrf.mxu0
  %v1617 = vadd.f32 %v1595, %v1616
  %1618 = vdwg.mxu0
  %vm1619 = vcmask 7168
  %1620 = vst.msk [vmem:[%s4] sm:$0xff] %vm1619, %v1617
  // Predicated region
  $region18: #{forecaster_forward.1} parent=0 // pred_check
    _
  $region19: #{forecaster_forward.1} parent=0 // pred_check_branch
    %1622 = sbr.rel (0) target = $region21
  $region20: #{forecaster_forward.1} parent=0 // pred_region
    _
  $region21: #{forecaster_forward.1} parent=0 // pred_fallthru
    _
  // Predicated region
  $region22: #{forecaster_forward.1} parent=0 // pred_check
    _
  $region23: #{forecaster_forward.1} parent=0 // pred_check_branch
    %1624 = sbr.rel (0) target = $region25
  $region24: #{forecaster_forward.1} parent=0 // pred_region
    _
  $region25: #{forecaster_forward.1} parent=0 // pred_fallthru
    _

</llo_original>
